<compile_context>
chip_gen: v7x
topology: tpu7x:2x2x1
jax: 0.10.0
libtpu: 0.0.40
codegen_flags: <defaults>
</compile_context>

<pallas_src>
import functools

import jax
import jax.numpy as jnp
from jax.experimental import pallas as pl
from jax.experimental.pallas import tpu as pltpu


# ----------------------------- helpers -----------------------------


def _round_up(x, m):
    return (x + m - 1) // m * m


def _gelu(x):
    # tanh-approximate GELU; tanh routes to the EUP slot (cheap vs. a VALU erf poly).
    # TODO(synk): switch to exact erf GELU if/when Mosaic exposes an erf lowering.
    c = 0.7978845608028654  # sqrt(2/pi)
    return 0.5 * x * (1.0 + jnp.tanh(c * (x + 0.044715 * x * x * x)))


def _default_compute_dtype():
    """bf16 elementwise on chips with a bf16 VALU/EUP (v6e / v7x); f32 on v5e and older."""
    try:
        kind = jax.devices()[0].device_kind.lower()
    except Exception:
        return jnp.float32
    if ("v6" in kind) or ("v7" in kind) or ("7x" in kind):
        return jnp.bfloat16
    return jnp.float32


def _pick_bt(N, HW, C):
    """Images per mixer-block grid step: amortize per-step overhead while keeping
    >= 2 grid steps (megacore) and the ~10x f32 live intermediates within budget."""
    budget = 8 * 1024 * 1024
    bt = 1
    for cand in range(2, N + 1):
        if N % cand:
            continue
        if N >= 2 and N // cand < 2:
            break
        if cand * HW * C * 4 * 10 > budget:
            break
        bt = cand
    return bt


# ----------------------------- Pallas kernels -----------------------------


def _mm_gelu_bn_kernel(x_ref, w_ref, vec_ref, o_ref):
    """(tm, Kp)bf16 @ (Kp, C)bf16 -> f32 acc -> +bias -> GELU -> folded BN -> bf16."""
    y = jnp.dot(x_ref[...], w_ref[...], preferred_element_type=jnp.float32)
    v = vec_ref[...]                                  # (3, C): bias, bn_scale, bn_shift
    y = _gelu(y + v[0:1]) * v[1:2] + v[2:3]
    o_ref[...] = y.astype(o_ref.dtype)


def mm_gelu_bn(x, w, vec, tile_m=512):
    M, K = x.shape
    C = w.shape[1]
    tm = min(tile_m, _round_up(M, 8))
    Mp = _round_up(M, tm)
    if Mp != M:
        x = jnp.pad(x, ((0, Mp - M), (0, 0)))
    out = pl.pallas_call(
        _mm_gelu_bn_kernel,
        out_shape=jax.ShapeDtypeStruct((Mp, C), jnp.bfloat16),
        grid=(Mp // tm,),
        in_specs=[
            pl.BlockSpec((tm, K), lambda i: (i, 0)),
            pl.BlockSpec((K, C), lambda i: (0, 0)),
            pl.BlockSpec((3, C), lambda i: (0, 0)),
        ],
        out_specs=pl.BlockSpec((tm, C), lambda i: (i, 0)),
        compiler_params=pltpu.CompilerParams(dimension_semantics=("parallel",)),
    )(x, w, vec)
    return out[:M] if Mp != M else out


def _mixer_block_math(x_ref, wsp_ref, vec_ref, wc_ref, *, ksize, H, W, Bt, cdt):
    """Fused mixer block on a flattened (Bt*HW, C) tile:
    Residual(dwConv(1,k)+GELU+BN -> dwConv(k,1)+GELU+BN), then 1x1 channel-mixer
    matmul + GELU + BN.  Returns the f32 (Bt*HW, C) result."""
    HW = H * W
    M = Bt * HW
    pad = ksize // 2
    C = x_ref.shape[-1]

    x = x_ref[...].reshape(M, C).astype(cdt)          # bf16-stored activation -> cdt
    ws = wsp_ref[...]                                 # (2*ksize, C): w1 rows | w2 rows
    vec = vec_ref[...]                                # (9, C): b1,s1,t1,b2,s2,t2,bc,sc,tc

    # position indices for edge masks ('same' zero padding); W and HW are usually 2^n
    flat = jax.lax.broadcasted_iota(jnp.int32, (M, 1), 0)
    if W & (W - 1) == 0:
        w_pos = jnp.bitwise_and(flat, W - 1)          # column within the row
    else:
        w_pos = jax.lax.rem(flat, W)
    if HW & (HW - 1) == 0:
        img_pos = jnp.bitwise_and(flat, HW - 1)       # position within the image
    else:
        img_pos = jax.lax.rem(flat, HW)

    # ---- depthwise Conv2d(C, C, (1, k), groups=C, padding='same') + GELU + BN ----
    y = x * ws[pad:pad + 1, :]                        # centre tap (no shift, no mask)
    for j in range(ksize):
        d = j - pad
        if d == 0:
            continue
        shifted = pltpu.roll(x, shift=(-d) % M, axis=0)          # out[i] = x[i + d]
        # single-sided bound check: only one edge can be violated per tap sign
        valid = (w_pos < W - d) if d > 0 else (w_pos >= -d)
        y = y + jnp.where(valid, shifted, 0.0) * ws[j:j + 1, :]
    y = _gelu(y + vec[0:1]) * vec[1:2] + vec[2:3]

    # ---- depthwise Conv2d(C, C, (k, 1), groups=C, padding='same') + GELU + BN ----
    z = y * ws[ksize + pad:ksize + pad + 1, :]
    for j in range(ksize):
        d = j - pad
        if d == 0:
            continue
        shifted = pltpu.roll(y, shift=(-d * W) % M, axis=0)      # out[i] = y[i + d*W]
        valid = (img_pos < HW - d * W) if d > 0 else (img_pos >= -d * W)
        z = z + jnp.where(valid, shifted, 0.0) * ws[ksize + j:ksize + j + 1, :]
    z = _gelu(z + vec[3:4]) * vec[4:5] + vec[5:6]

    r = z + x                                                     # Residual

    # ---- channel mixer: 1x1 conv (segment-mix ⊕ identity) + GELU + BN (f32 acc) ----
    cm = jnp.dot(r.astype(jnp.bfloat16), wc_ref[...],
                 preferred_element_type=jnp.float32)
    cm = _gelu(cm + vec[6:7]) * vec[7:8] + vec[8:9]
    return cm


def _mixer_block_kernel(x_ref, wsp_ref, vec_ref, wc_ref, o_ref,
                        *, ksize, H, W, Bt, cdt):
    out = _mixer_block_math(x_ref, wsp_ref, vec_ref, wc_ref,
                            ksize=ksize, H=H, W=W, Bt=Bt, cdt=cdt)
    o_ref[...] = out.reshape(Bt, H * W, out.shape[-1]).astype(o_ref.dtype)


def _mixer_block_pool_kernel(x_ref, wsp_ref, vec_ref, wc_ref, o_ref, p_ref,
                             *, ksize, H, W, Bt, cdt):
    out = _mixer_block_math(x_ref, wsp_ref, vec_ref, wc_ref,
                            ksize=ksize, H=H, W=W, Bt=Bt, cdt=cdt)
    C = out.shape[-1]
    out3 = out.reshape(Bt, H * W, C)
    o_ref[...] = out3.astype(o_ref.dtype)
    # fused global average pool (per image) from the f32 values
    p_ref[...] = jnp.mean(out3, axis=1)[:, None, :]


def mixer_block(feat, blk, *, ksize, H, W, cdt, with_pool):
    N, HW, C = feat.shape
    Bt = _pick_bt(N, HW, C)
    grid = (N // Bt,)
    kern_fn = _mixer_block_pool_kernel if with_pool else _mixer_block_kernel
    kern = functools.partial(kern_fn, ksize=ksize, H=H, W=W, Bt=Bt, cdt=cdt)

    full = lambda n: (0, 0)
    in_specs = [
        pl.BlockSpec((Bt, HW, C), lambda n: (n, 0, 0)),
        pl.BlockSpec((2 * ksize, C), full),
        pl.BlockSpec((9, C), full),
        pl.BlockSpec((C, C), full),
    ]
    feat_spec = pl.BlockSpec((Bt, HW, C), lambda n: (n, 0, 0))
    feat_shape = jax.ShapeDtypeStruct((N, HW, C), jnp.bfloat16)
    if with_pool:
        out_shape = (feat_shape, jax.ShapeDtypeStruct((N, 1, C), jnp.float32))
        out_specs = (feat_spec, pl.BlockSpec((Bt, 1, C), lambda n: (n, 0, 0)))
    else:
        out_shape = feat_shape
        out_specs = feat_spec

    # rough VMEM bound: double-buffered bf16 in/out blocks + ~8x (Bt*HW, C) f32 live
    est = Bt * HW * C * (2 * 2 * 2 + 2 * 2 + 8 * 4) + C * C * 2 * 2 + (2 * ksize + 9) * C * 8
    vlim = None
    if est > 30 * 1024 * 1024:
        # TODO(synk): prefer H-row-strip tiling with a ksize//2 halo at this scale
        # (v7x has only 64 MiB physical VMEM).
        vlim = min(int(est * 1.25), 100 * 1024 * 1024)

    out = pl.pallas_call(
        kern,
        out_shape=out_shape,
        grid=grid,
        in_specs=in_specs,
        out_specs=out_specs,
        compiler_params=pltpu.CompilerParams(
            dimension_semantics=("parallel",), vmem_limit_bytes=vlim),
    )(feat, blk["wsp"], blk["vec"], blk["wc"])
    if with_pool:
        return out[0], out[1]
    return out, None


def _head_kernel(p_ref, w_ref, b_ref, o_ref):
    """Single batched head matmul: (Np, Cp)bf16 @ (Cp, NCp)bf16 + bias -> f32."""
    y = jnp.dot(p_ref[...], w_ref[...], preferred_element_type=jnp.float32)
    o_ref[...] = y + b_ref[...]


def head_linear(pooled, w, b):
    N, C = pooled.shape
    NCp = w.shape[1]
    Np = _round_up(max(N, 8), 8)
    p = jnp.pad(pooled, ((0, Np - N), (0, 0))).astype(jnp.bfloat16)
    out = pl.pallas_call(
        _head_kernel,
        out_shape=jax.ShapeDtypeStruct((Np, NCp), jnp.float32),
        grid=(1,),
        in_specs=[
            pl.BlockSpec((Np, C), lambda i: (0, 0)),
            pl.BlockSpec((C, NCp), lambda i: (0, 0)),
            pl.BlockSpec((1, NCp), lambda i: (0, 0)),
        ],
        out_specs=pl.BlockSpec((Np, NCp), lambda i: (0, 0)),
    )(p, w, b)
    return out[:N]


# ----------------------------- glue: patches & params -----------------------------


def extract_patches(x_nchw, p):
    """Conv2d(3, hdim, k=p, stride=p) rewritten as patch-flatten + matmul (plain-JAX glue)."""
    N, Cin, H, W = x_nchw.shape
    x = x_nchw.reshape(N, Cin, H // p, p, W // p, p)
    x = x.transpose(0, 2, 4, 1, 3, 5)                 # N, Hp, Wp, Cin, p, p
    return x.reshape(N * (H // p) * (W // p), Cin * p * p)


def init_raw_params(key, *, hdim, patch, ksize, num_blocks, num_classes, ratio):
    """Deterministic f32 parameters, already zero-padded to lane multiples."""
    Cp = _round_up(hdim, 128)
    NCp = _round_up(num_classes, 128)
    Kp = _round_up(3 * patch * patch, 128)
    cmix = int(hdim * ratio)
    keys = iter(jax.random.split(key, 128))

    def nrm(shape, scale=0.1):
        return scale * jax.random.normal(next(keys), shape, jnp.float32)

    def padc(a):                                      # zero-pad last dim hdim -> Cp
        return jnp.pad(a, [(0, 0)] * (a.ndim - 1) + [(0, Cp - a.shape[-1])])

    def bn_fold():
        gamma = 1.0 + nrm((hdim,))
        beta = nrm((hdim,))
        mean = nrm((hdim,))
        var = 1.0 + jnp.abs(nrm((hdim,)))
        scale = gamma * jax.lax.rsqrt(var + 1e-5)
        shift = beta - mean * scale
        return padc(scale.reshape(1, hdim)), padc(shift.reshape(1, hdim))

    params = {}

    # patch_emb: Conv2d(3, hdim, k=patch, stride=patch) -> GELU -> BN (as matmul, K padded)
    w_pe = nrm((hdim, 3, patch, patch)).reshape(hdim, 3 * patch * patch).T   # (K, hdim)
    w_pe = jnp.pad(padc(w_pe), ((0, Kp - w_pe.shape[0]), (0, 0)))            # (Kp, Cp)
    s, t = bn_fold()
    params["patch_emb"] = dict(w=w_pe, b=padc(nrm((1, hdim))), scale=s, shift=t)

    params["blocks"] = []
    for i in range(num_blocks):
        blk = {}
        w1 = padc(nrm((hdim, ksize)).T)      # (k, Cp):  w1[j, c] = W_torch[c, 0, 0, j]
        s1, t1 = bn_fold()
        w2 = padc(nrm((hdim, ksize)).T)      # (k, Cp):  w2[j, c] = W_torch[c, 0, j, 0]
        s2, t2 = bn_fold()
        blk["spatial"] = dict(w1=w1, b1=padc(nrm((1, hdim))), s1=s1, t1=t1,
                              w2=w2, b2=padc(nrm((1, hdim))), s2=s2, t2=t2)

        # ChannelMixerI: mix a cmix-channel segment (front if even block, back if odd),
        # realized as a full Cp x Cp matmul = segment W_mix ⊕ identity ⊕ zero lane-pad.
        wm = nrm((cmix, cmix), scale=1.0 / float(cmix) ** 0.5)   # torch (out, in)
        bm = nrm((cmix,))
        start = (hdim - cmix) if (i % 2 == 1) else 0
        diag = jnp.concatenate([jnp.ones((hdim,), jnp.float32),
                                jnp.zeros((Cp - hdim,), jnp.float32)])
        wfull = jnp.diag(diag)
        wfull = wfull.at[start:start + cmix, start:start + cmix].set(wm.T)
        bfull = jnp.zeros((1, Cp), jnp.float32).at[0, start:start + cmix].set(bm)
        sc, sh = bn_fold()
        blk["channel"] = dict(w=wfull, b=bfull, scale=sc, shift=sh)
        params["blocks"].append(blk)

    # head: SelectAdaptivePool2d('avg', flatten) + Linear(hdim, num_classes)
    w_head = nrm((num_classes, hdim), scale=1.0 / float(hdim) ** 0.5)        # torch (out, in)
    wh = jnp.zeros((Cp, NCp), jnp.float32).at[:hdim, :num_classes].set(w_head.T)
    bh = jnp.zeros((1, NCp), jnp.float32).at[0, :num_classes].set(nrm((num_classes,)))
    params["head"] = dict(w=wh, b=bh)
    return params


def pack_params(raw, compute_dtype):
    """Pack raw f32 params into the kernel layout (few inputs, right dtypes)."""
    cdt = compute_dtype
    pe = raw["patch_emb"]
    packed = {"patch_emb": dict(
        w=pe["w"].astype(jnp.bfloat16),
        vec=jnp.concatenate([pe["b"], pe["scale"], pe["shift"]], axis=0))}   # (3, Cp) f32
    blocks = []
    for blk in raw["blocks"]:
        sp, ch = blk["spatial"], blk["channel"]
        wsp = jnp.concatenate([sp["w1"], sp["w2"]], axis=0).astype(cdt)      # (2k, Cp)
        vec = jnp.concatenate([sp["b1"], sp["s1"], sp["t1"],
                               sp["b2"], sp["s2"], sp["t2"],
                               ch["b"], ch["scale"], ch["shift"]], axis=0).astype(cdt)
        blocks.append(dict(wsp=wsp, vec=vec, wc=ch["w"].astype(jnp.bfloat16)))
    packed["blocks"] = blocks
    packed["head"] = dict(w=raw["head"]["w"].astype(jnp.bfloat16), b=raw["head"]["b"])
    return packed


def splitmixer_forward(x_nchw, params, *, patch, ksize, num_classes, compute_dtype):
    N, _, H, W = x_nchw.shape
    Hp, Wp = H // patch, W // patch
    HW = Hp * Wp

    tokens = extract_patches(x_nchw, patch)
    Kp = params["patch_emb"]["w"].shape[0]
    tokens = jnp.pad(tokens, ((0, 0), (0, Kp - tokens.shape[1]))).astype(jnp.bfloat16)
    pe = params["patch_emb"]
    feat = mm_gelu_bn(tokens, pe["w"], pe["vec"])                   # (M, Cp) bf16
    Cp = feat.shape[-1]
    feat = feat.reshape(N, HW, Cp)

    nb = len(params["blocks"])
    pooled = None
    for bi, blk in enumerate(params["blocks"]):
        feat, p = mixer_block(feat, blk, ksize=ksize, H=Hp, W=Wp,
                              cdt=compute_dtype, with_pool=(bi == nb - 1))
        if p is not None:
            pooled = p                                              # (N, 1, Cp) f32

    hd = params["head"]
    logits = head_linear(pooled.reshape(N, Cp), hd["w"], hd["b"])   # (N, NCp) f32
    return logits[:, :num_classes]


# ----------------------------- pure-JAX reference (correctness check) -----------------------------


def reference_forward(x_nchw, raw, *, patch, ksize, num_classes, compute_dtype):
    cdt = compute_dtype
    N, _, H, W = x_nchw.shape
    Hp, Wp = H // patch, W // patch
    pad = ksize // 2

    pe = raw["patch_emb"]
    Kp = pe["w"].shape[0]
    tokens = extract_patches(x_nchw, patch)
    tokens = jnp.pad(tokens, ((0, 0), (0, Kp - tokens.shape[1]))).astype(jnp.bfloat16)
    y = jnp.dot(tokens, pe["w"].astype(jnp.bfloat16), preferred_element_type=jnp.float32)
    y = _gelu(y + pe["b"]) * pe["scale"] + pe["shift"]
    Cp = y.shape[-1]
    feat = y.astype(jnp.bfloat16).reshape(N, Hp, Wp, Cp)

    last_f32 = None
    for blk in raw["blocks"]:
        sp, ch = blk["spatial"], blk["channel"]
        xb = feat.astype(cdt)
        w1 = sp["w1"].astype(cdt); w2 = sp["w2"].astype(cdt)
        b1 = sp["b1"].astype(cdt); s1 = sp["s1"].astype(cdt); t1 = sp["t1"].astype(cdt)
        b2 = sp["b2"].astype(cdt); s2 = sp["s2"].astype(cdt); t2 = sp["t2"].astype(cdt)

        xp = jnp.pad(xb, ((0, 0), (0, 0), (pad, pad), (0, 0)))
        y = xb * w1[pad].reshape(1, 1, 1, Cp)
        for j in range(ksize):
            if j == pad:
                continue
            y = y + xp[:, :, j:j + Wp, :] * w1[j].reshape(1, 1, 1, Cp)
        y = (_gelu(y + b1.reshape(1, 1, 1, Cp)) * s1.reshape(1, 1, 1, Cp)
             + t1.reshape(1, 1, 1, Cp))

        yp = jnp.pad(y, ((0, 0), (pad, pad), (0, 0), (0, 0)))
        z = y * w2[pad].reshape(1, 1, 1, Cp)
        for j in range(ksize):
            if j == pad:
                continue
            z = z + yp[:, j:j + Hp, :, :] * w2[j].reshape(1, 1, 1, Cp)
        z = (_gelu(z + b2.reshape(1, 1, 1, Cp)) * s2.reshape(1, 1, 1, Cp)
             + t2.reshape(1, 1, 1, Cp))

        r = z + xb
        cm = jnp.dot(r.reshape(-1, Cp).astype(jnp.bfloat16),
                     ch["w"].astype(jnp.bfloat16), preferred_element_type=jnp.float32)
        cm = (_gelu(cm + ch["b"].astype(cdt)) * ch["scale"].astype(cdt)
              + ch["shift"].astype(cdt))
        last_f32 = cm.reshape(N, Hp * Wp, Cp)
        feat = cm.astype(jnp.bfloat16).reshape(N, Hp, Wp, Cp)

    pooled = last_f32.mean(axis=1)                                  # (N, Cp) f32
    hd = raw["head"]
    logits = jnp.dot(pooled.astype(jnp.bfloat16), hd["w"].astype(jnp.bfloat16),
                     preferred_element_type=jnp.float32) + hd["b"]
    return logits[:, :num_classes]


# ----------------------------- main -----------------------------

if __name__ == "__main__":
    key = jax.random.PRNGKey(0)
    kp, kx = jax.random.split(key)

    # small but faithful config: img 32x32 RGB, patch 2 -> 16x16 tokens, hdim 96 (lane-padded to 128)
    N, Cin, H, W = 2, 3, 32, 32
    hdim, num_blocks, ksize, patch, num_classes, ratio = 96, 2, 5, 2, 10, 2.0 / 3.0

    raw = init_raw_params(kp, hdim=hdim, patch=patch, ksize=ksize,
                          num_blocks=num_blocks, num_classes=num_classes, ratio=ratio)
    x = jax.random.normal(kx, (N, Cin, H, W), jnp.float32)

    # 1) always-validated f32-elementwise path (works on every TPU generation)
    params32 = pack_params(raw, jnp.float32)
    logits = splitmixer_forward(x, params32, patch=patch, ksize=ksize,
                                num_classes=num_classes, compute_dtype=jnp.float32)
    jax.block_until_ready(logits)
    assert logits.shape == (N, num_classes)
    assert bool(jnp.all(jnp.isfinite(logits)))
    ref = reference_forward(x, raw, patch=patch, ksize=ksize,
                            num_classes=num_classes, compute_dtype=jnp.float32)
    err = float(jnp.max(jnp.abs(logits - ref)))
    assert err < 1e-2, "f32 path max abs diff vs reference: %f" % err

    # 2) bf16-elementwise fast path on chips with a bf16 VALU/EUP (v6e / v7x)
    cdt = _default_compute_dtype()
    if cdt == jnp.bfloat16:
        try:
            params16 = pack_params(raw, jnp.bfloat16)
            logits16 = splitmixer_forward(x, params16, patch=patch, ksize=ksize,
                                          num_classes=num_classes,
                                          compute_dtype=jnp.bfloat16)
            jax.block_until_ready(logits16)
            ref16 = reference_forward(x, raw, patch=patch, ksize=ksize,
                                      num_classes=num_classes,
                                      compute_dtype=jnp.bfloat16)
            err16 = float(jnp.max(jnp.abs(logits16 - ref16)))
            assert err16 < 6e-2
        except Exception:
            # TODO(synk): bf16 sublane rolls unsupported on this toolchain/chip; the
            # validated f32 elementwise path above remains the production fallback.
            pass

    print("KERNEL_OK")
</pallas_src>

<mosaic_0001>
module attributes {stable_mosaic.version = 11 : i64} {
  func.func @_mm_gelu_bn_kernel(%arg0: i32, %arg1: memref<512x128xbf16, #tpu.memory_space<vmem>>, %arg2: memref<128x128xbf16, #tpu.memory_space<vmem>>, %arg3: memref<3x128xf32, #tpu.memory_space<vmem>>, %arg4: memref<512x128xbf16, #tpu.memory_space<vmem>>) attributes {dimension_semantics = [#tpu.dimension_semantics<parallel>], iteration_bounds = array<i64: 1>, scalar_prefetch = 0 : i64, scratch_operands = 0 : i64, tpu.core_type = #tpu.core_type<tc>, window_params = [{transform_indices = @transform_0, window_bounds = array<i64: 512, 128>}, {pipeline_mode = #tpu.pipeline_mode<synchronous>, transform_indices = @transform_1, window_bounds = array<i64: 128, 128>}, {pipeline_mode = #tpu.pipeline_mode<synchronous>, transform_indices = @transform_2, window_bounds = array<i64: 3, 128>}, {transform_indices = @transform_3, window_bounds = array<i64: 512, 128>}]} {
    %c0 = arith.constant 0 : index
    %c0_0 = arith.constant 0 : index
    %0 = vector.load %arg1[%c0, %c0_0] : memref<512x128xbf16, #tpu.memory_space<vmem>>, vector<512x128xbf16>
    %c0_1 = arith.constant 0 : index
    %c0_2 = arith.constant 0 : index
    %1 = vector.load %arg2[%c0_1, %c0_2] : memref<128x128xbf16, #tpu.memory_space<vmem>>, vector<128x128xbf16>
    %cst = arith.constant dense<0.000000e+00> : vector<512x128xf32>
    %2 = tpu.matmul %0, %1, %cst {dimension_numbers = #tpu.dot_dimension_numbers<[1], [0], [0], [1], [0, 0, 1, 1], [], []>} : vector<512x128xbf16>, vector<128x128xbf16>, vector<512x128xf32> -> vector<512x128xf32>
    %c0_3 = arith.constant 0 : index
    %c0_4 = arith.constant 0 : index
    %3 = vector.load %arg3[%c0_3, %c0_4] : memref<3x128xf32, #tpu.memory_space<vmem>>, vector<3x128xf32>
    %4 = vector.extract_strided_slice %3 {offsets = [0, 0], sizes = [1, 128], strides = [1, 1]} : vector<3x128xf32> to vector<1x128xf32>
    %5 = vector.broadcast %4 : vector<1x128xf32> to vector<512x128xf32>
    %6 = arith.addf %2, %5 : vector<512x128xf32>
    %cst_5 = arith.constant 5.000000e-01 : f32
    %7 = vector.broadcast %cst_5 : f32 to vector<512x128xf32>
    %8 = arith.mulf %7, %6 : vector<512x128xf32>
    %cst_6 = arith.constant 4.471500e-02 : f32
    %9 = vector.broadcast %cst_6 : f32 to vector<512x128xf32>
    %10 = arith.mulf %9, %6 : vector<512x128xf32>
    %11 = arith.mulf %10, %6 : vector<512x128xf32>
    %12 = arith.mulf %11, %6 : vector<512x128xf32>
    %13 = arith.addf %6, %12 : vector<512x128xf32>
    %cst_7 = arith.constant 0.797884583 : f32
    %14 = vector.broadcast %cst_7 : f32 to vector<512x128xf32>
    %15 = arith.mulf %14, %13 : vector<512x128xf32>
    %16 = math.tanh %15 : vector<512x128xf32>
    %cst_8 = arith.constant 1.000000e+00 : f32
    %17 = vector.broadcast %cst_8 : f32 to vector<512x128xf32>
    %18 = arith.addf %17, %16 : vector<512x128xf32>
    %19 = arith.mulf %8, %18 : vector<512x128xf32>
    %20 = vector.extract_strided_slice %3 {offsets = [1, 0], sizes = [1, 128], strides = [1, 1]} : vector<3x128xf32> to vector<1x128xf32>
    %21 = vector.broadcast %20 : vector<1x128xf32> to vector<512x128xf32>
    %22 = arith.mulf %19, %21 : vector<512x128xf32>
    %23 = vector.extract_strided_slice %3 {offsets = [2, 0], sizes = [1, 128], strides = [1, 1]} : vector<3x128xf32> to vector<1x128xf32>
    %24 = vector.broadcast %23 : vector<1x128xf32> to vector<512x128xf32>
    %25 = arith.addf %22, %24 : vector<512x128xf32>
    %26 = arith.truncf %25 : vector<512x128xf32> to vector<512x128xbf16>
    %c0_9 = arith.constant 0 : index
    %c0_10 = arith.constant 0 : index
    %27 = vector.load %arg4[%c0_9, %c0_10] : memref<512x128xbf16, #tpu.memory_space<vmem>>, vector<512x128xbf16>
    tpu.vector_store %arg4[%c0_9, %c0_10], %26 {strides = array<i32>} : memref<512x128xbf16, #tpu.memory_space<vmem>>, vector<512x128xbf16>,
    return
  }
  func.func @transform_0(%arg0: i32) -> (i32, i32) {
    %c0_i32 = arith.constant 0 : i32
    %c0_i32_0 = arith.constant 0 : i32
    return %arg0, %c0_i32 : i32, i32
  }
  func.func @transform_1(%arg0: i32) -> (i32, i32) {
    %c0_i32 = arith.constant 0 : i32
    %c0_i32_0 = arith.constant 0 : i32
    %c0_i32_1 = arith.constant 0 : i32
    return %c0_i32, %c0_i32_0 : i32, i32
  }
  func.func @transform_2(%arg0: i32) -> (i32, i32) {
    %c0_i32 = arith.constant 0 : i32
    %c0_i32_0 = arith.constant 0 : i32
    %c0_i32_1 = arith.constant 0 : i32
    return %c0_i32, %c0_i32_0 : i32, i32
  }
  func.func @transform_3(%arg0: i32) -> (i32, i32) {
    %c0_i32 = arith.constant 0 : i32
    %c0_i32_0 = arith.constant 0 : i32
    return %arg0, %c0_i32 : i32, i32
  }
}

</mosaic_0001>

<llo_original>
// kernel: tpu_custom_call.1
$region0: #{tpu_custom_call.1}
  #allocation0 [shape = 'u32[]', space=smem, size = 0x4, offset = 0x4, fixed_abs, tag = 'smem constant byte address 0x4 - core index']
  #allocation1 [shape = 'u32[144,128]{1,0:T(1,128)}', space=vmem, size = 0x12000, scoped, tag = 'internal scratch']
  %s0 = inlined_call_operand.hbm [shape: bf16[512,128], index: 0, kind: input, shape index: {}]
  %s1 = inlined_call_operand.hbm [shape: bf16[128,128], index: 1, kind: input, shape index: {}]
  %s2 = inlined_call_operand.vmem [shape: f32[3,128], index: 2, kind: input, shape index: {}]
  %s3 = inlined_call_operand.hbm [shape: bf16[512,128], index: 3, kind: output, shape index: {}]
  %s4 = sld [smem:[#allocation0]]
  $region30: #{tpu_custom_call.1} parent=0
    _
  %s6 = ssub.s32 1, %s4
  %s7 = scalar_select 0, %s6, %s4
  $region1: #{tpu_custom_call.1} parent=0
    #allocation2 [shape = 'u8[131072]{0}', space=vmem, size = 0x20000, scoped, tag = 'input window, operand 0, single buffered']
    #allocation3 [shape = 's32[1]{0}', space=sflag, size = 0x4, scoped, tag = 'scoped memory for tpu_custom_call.1']
    #allocation4 [shape = 's32[1]{0}', space=sflag, size = 0x4, scoped, tag = 'scoped memory for tpu_custom_call.1']
    #allocation5 [shape = 'u8[32768]{0}', space=vmem, size = 0x8000, scoped, tag = 'input window, operand 1, single buffered']
    #allocation6 [shape = 's32[1]{0}', space=sflag, size = 0x4, scoped, tag = 'scoped memory for tpu_custom_call.1']
    #allocation7 [shape = 'u8[131072]{0}', space=vmem, size = 0x20000, scoped, tag = 'output window, operand 0, single buffered']
    %8 = vsyncpa [#allocation3], 0
    %9 = vsyncpa [#allocation6], 0
    %10 = vsyncpa [#allocation4], 0
    // Predicated region
    $region2: #{tpu_custom_call.1} parent=1 // pred_check
      _
    $region3: #{tpu_custom_call.1} parent=1 // pred_check_branch
      %12 = sbr.rel (0) target = $region5
    $region4: #{tpu_custom_call.1} parent=1 // pred_region
      %s14 = ssub.s32 4096, 4096
      %15 = vsyncadd [#allocation3], %s14
      %s16 = sshll.u32 [#allocation2], 4
      %s17 = int_to_ptr.vmem [resolvable:$true] %s16
      %22 = dma.hbm_to_vmem [thread:$0]  %s0, 4096, %s17, [#allocation3], 64, 64, 4
    $region5: #{tpu_custom_call.1} parent=1 // pred_fallthru
      _
    // Predicated region
    $region6: #{tpu_custom_call.1} parent=1 // pred_check
      _
    $region7: #{tpu_custom_call.1} parent=1 // pred_check_branch
      %24 = sbr.rel (0) target = $region9
    $region8: #{tpu_custom_call.1} parent=1 // pred_region
      %s26 = ssub.s32 1024, 1024
      %27 = vsyncadd [#allocation6], %s26
      %s28 = sshll.u32 [#allocation5], 4
      %s29 = int_to_ptr.vmem [resolvable:$true] %s28
      %34 = dma.hbm_to_vmem [thread:$0]  %s1, 1024, %s29, [#allocation6], 64, 64, 4
    $region9: #{tpu_custom_call.1} parent=1 // pred_fallthru
      _
    // Predicated region
    $region10: #{tpu_custom_call.1} parent=1 // pred_check
      _
    $region11: #{tpu_custom_call.1} parent=1 // pred_check_branch
      %36 = sbr.rel (0) target = $region13
    $region12: #{tpu_custom_call.1} parent=1 // pred_region
      _
    $region13: #{tpu_custom_call.1} parent=1 // pred_fallthru
      _
    // Predicated region
    $region14: #{tpu_custom_call.1} parent=1 // pred_check
      _
    $region15: #{tpu_custom_call.1} parent=1 // pred_check_branch
      %38 = sbr.rel (0) target = $region17
    $region16: #{tpu_custom_call.1} parent=1 // pred_region
      %39 = dma.done [#allocation3], 4096
    $region17: #{tpu_custom_call.1} parent=1 // pred_fallthru
      _
    // Predicated region
    $region18: #{tpu_custom_call.1} parent=1 // pred_check
      _
    $region19: #{tpu_custom_call.1} parent=1 // pred_check_branch
      %41 = sbr.rel (0) target = $region21
    $region20: #{tpu_custom_call.1} parent=1 // pred_region
      %42 = dma.done [#allocation6], 1024
    $region21: #{tpu_custom_call.1} parent=1 // pred_fallthru
      _
    %v44 = vld [vmem:[#allocation2] sm:$0xf]
    %v45 = vld [vmem:[#allocation2 + $0x4] sm:$0xf]
    %v46 = vld [vmem:[#allocation2 + $0x8] sm:$0xf]
    %v47 = vld [vmem:[#allocation2 + $0xc] sm:$0xf]
    %v48 = vld [vmem:[#allocation2 + $0x10] sm:$0xf]
    %v49 = vld [vmem:[#allocation2 + $0x14] sm:$0xf]
    %v50 = vld [vmem:[#allocation2 + $0x18] sm:$0xf]
    %v51 = vld [vmem:[#allocation2 + $0x1c] sm:$0xf]
    %v52 = vld [vmem:[#allocation2 + $0x20] sm:$0xf]
    %v53 = vld [vmem:[#allocation2 + $0x24] sm:$0xf]
    %v54 = vld [vmem:[#allocation2 + $0x28] sm:$0xf]
    %v55 = vld [vmem:[#allocation2 + $0x2c] sm:$0xf]
    %v56 = vld [vmem:[#allocation2 + $0x30] sm:$0xf]
    %v57 = vld [vmem:[#allocation2 + $0x34] sm:$0xf]
    %v58 = vld [vmem:[#allocation2 + $0x38] sm:$0xf]
    %v59 = vld [vmem:[#allocation2 + $0x3c] sm:$0xf]
    %v60 = vld [vmem:[#allocation2 + $0x40] sm:$0xf]
    %v61 = vld [vmem:[#allocation2 + $0x44] sm:$0xf]
    %v62 = vld [vmem:[#allocation2 + $0x48] sm:$0xf]
    %v63 = vld [vmem:[#allocation2 + $0x4c] sm:$0xf]
    %v64 = vld [vmem:[#allocation2 + $0x50] sm:$0xf]
    %v65 = vld [vmem:[#allocation2 + $0x54] sm:$0xf]
    %v66 = vld [vmem:[#allocation2 + $0x58] sm:$0xf]
    %v67 = vld [vmem:[#allocation2 + $0x5c] sm:$0xf]
    %v68 = vld [vmem:[#allocation2 + $0x60] sm:$0xf]
    %v69 = vld [vmem:[#allocation2 + $0x64] sm:$0xf]
    %v70 = vld [vmem:[#allocation2 + $0x68] sm:$0xf]
    %v71 = vld [vmem:[#allocation2 + $0x6c] sm:$0xf]
    %v72 = vld [vmem:[#allocation2 + $0x70] sm:$0xf]
    %v73 = vld [vmem:[#allocation2 + $0x74] sm:$0xf]
    %v74 = vld [vmem:[#allocation2 + $0x78] sm:$0xf]
    %v75 = vld [vmem:[#allocation2 + $0x7c] sm:$0xf]
    %v76 = vld [vmem:[#allocation2 + $0x80] sm:$0xf]
    %v77 = vld [vmem:[#allocation2 + $0x84] sm:$0xf]
    %v78 = vld [vmem:[#allocation2 + $0x88] sm:$0xf]
    %v79 = vld [vmem:[#allocation2 + $0x8c] sm:$0xf]
    %v80 = vld [vmem:[#allocation2 + $0x90] sm:$0xf]
    %v81 = vld [vmem:[#allocation2 + $0x94] sm:$0xf]
    %v82 = vld [vmem:[#allocation2 + $0x98] sm:$0xf]
    %v83 = vld [vmem:[#allocation2 + $0x9c] sm:$0xf]
    %v84 = vld [vmem:[#allocation2 + $0xa0] sm:$0xf]
    %v85 = vld [vmem:[#allocation2 + $0xa4] sm:$0xf]
    %v86 = vld [vmem:[#allocation2 + $0xa8] sm:$0xf]
    %v87 = vld [vmem:[#allocation2 + $0xac] sm:$0xf]
    %v88 = vld [vmem:[#allocation2 + $0xb0] sm:$0xf]
    %v89 = vld [vmem:[#allocation2 + $0xb4] sm:$0xf]
    %v90 = vld [vmem:[#allocation2 + $0xb8] sm:$0xf]
    %v91 = vld [vmem:[#allocation2 + $0xbc] sm:$0xf]
    %v92 = vld [vmem:[#allocation2 + $0xc0] sm:$0xf]
    %v93 = vld [vmem:[#allocation2 + $0xc4] sm:$0xf]
    %v94 = vld [vmem:[#allocation2 + $0xc8] sm:$0xf]
    %v95 = vld [vmem:[#allocation2 + $0xcc] sm:$0xf]
    %v96 = vld [vmem:[#allocation2 + $0xd0] sm:$0xf]
    %v97 = vld [vmem:[#allocation2 + $0xd4] sm:$0xf]
    %v98 = vld [vmem:[#allocation2 + $0xd8] sm:$0xf]
    %v99 = vld [vmem:[#allocation2 + $0xdc] sm:$0xf]
    %v100 = vld [vmem:[#allocation2 + $0xe0] sm:$0xf]
    %v101 = vld [vmem:[#allocation2 + $0xe4] sm:$0xf]
    %v102 = vld [vmem:[#allocation2 + $0xe8] sm:$0xf]
    %v103 = vld [vmem:[#allocation2 + $0xec] sm:$0xf]
    %v104 = vld [vmem:[#allocation2 + $0xf0] sm:$0xf]
    %v105 = vld [vmem:[#allocation2 + $0xf4] sm:$0xf]
    %v106 = vld [vmem:[#allocation2 + $0xf8] sm:$0xf]
    %v107 = vld [vmem:[#allocation2 + $0xfc] sm:$0xf]
    %v108 = vld [vmem:[#allocation5] sm:$0xf]
    %v109 = vld [vmem:[#allocation5 + $0x4] sm:$0xf]
    %v110 = vld [vmem:[#allocation5 + $0x8] sm:$0xf]
    %v111 = vld [vmem:[#allocation5 + $0xc] sm:$0xf]
    %v112 = vld [vmem:[#allocation5 + $0x10] sm:$0xf]
    %v113 = vld [vmem:[#allocation5 + $0x14] sm:$0xf]
    %v114 = vld [vmem:[#allocation5 + $0x18] sm:$0xf]
    %v115 = vld [vmem:[#allocation5 + $0x1c] sm:$0xf]
    %v116 = vld [vmem:[#allocation5 + $0x20] sm:$0xf]
    %v117 = vld [vmem:[#allocation5 + $0x24] sm:$0xf]
    %v118 = vld [vmem:[#allocation5 + $0x28] sm:$0xf]
    %v119 = vld [vmem:[#allocation5 + $0x2c] sm:$0xf]
    %v120 = vld [vmem:[#allocation5 + $0x30] sm:$0xf]
    %v121 = vld [vmem:[#allocation5 + $0x34] sm:$0xf]
    %v122 = vld [vmem:[#allocation5 + $0x38] sm:$0xf]
    %v123 = vld [vmem:[#allocation5 + $0x3c] sm:$0xf]
    %v124 = vld [vmem:[%s2] sm:$0x7]
    %v125 = vlaneseq
    %v126 = vshrl.u32 %v125, 7
    %v127 = vsub.s32 0, %v126
    %v128 = vrot.slane %v124, %v127
    %v193 = vunpack.c.l.b16 %v44
    %v194 = vunpack.c.l.b16 %v45
    %v195 = vunpack.c.l.b16 %v46
    %v196 = vunpack.c.l.b16 %v47
    %v197 = vunpack.c.l.b16 %v48
    %v198 = vunpack.c.l.b16 %v49
    %v199 = vunpack.c.l.b16 %v50
    %v200 = vunpack.c.l.b16 %v51
    %v201 = vunpack.c.l.b16 %v52
    %v202 = vunpack.c.l.b16 %v53
    %v203 = vunpack.c.l.b16 %v54
    %v204 = vunpack.c.l.b16 %v55
    %v205 = vunpack.c.l.b16 %v56
    %v206 = vunpack.c.l.b16 %v57
    %v207 = vunpack.c.l.b16 %v58
    %v208 = vunpack.c.l.b16 %v59
    %v209 = vunpack.c.l.b16 %v60
    %v210 = vunpack.c.l.b16 %v61
    %v211 = vunpack.c.l.b16 %v62
    %v212 = vunpack.c.l.b16 %v63
    %v213 = vunpack.c.l.b16 %v64
    %v214 = vunpack.c.l.b16 %v65
    %v215 = vunpack.c.l.b16 %v66
    %v216 = vunpack.c.l.b16 %v67
    %v217 = vunpack.c.l.b16 %v68
    %v218 = vunpack.c.l.b16 %v69
    %v219 = vunpack.c.l.b16 %v70
    %v220 = vunpack.c.l.b16 %v71
    %v221 = vunpack.c.l.b16 %v72
    %v222 = vunpack.c.l.b16 %v73
    %v223 = vunpack.c.l.b16 %v74
    %v224 = vunpack.c.l.b16 %v75
    %v225 = vunpack.c.l.b16 %v76
    %v226 = vunpack.c.l.b16 %v77
    %v227 = vunpack.c.l.b16 %v78
    %v228 = vunpack.c.l.b16 %v79
    %v229 = vunpack.c.l.b16 %v80
    %v230 = vunpack.c.l.b16 %v81
    %v231 = vunpack.c.l.b16 %v82
    %v232 = vunpack.c.l.b16 %v83
    %v233 = vunpack.c.l.b16 %v84
    %v234 = vunpack.c.l.b16 %v85
    %v235 = vunpack.c.l.b16 %v86
    %v236 = vunpack.c.l.b16 %v87
    %v237 = vunpack.c.l.b16 %v88
    %v238 = vunpack.c.l.b16 %v89
    %v239 = vunpack.c.l.b16 %v90
    %v240 = vunpack.c.l.b16 %v91
    %v241 = vunpack.c.l.b16 %v92
    %v242 = vunpack.c.l.b16 %v93
    %v243 = vunpack.c.l.b16 %v94
    %v244 = vunpack.c.l.b16 %v95
    %v245 = vunpack.c.l.b16 %v96
    %v246 = vunpack.c.l.b16 %v97
    %v247 = vunpack.c.l.b16 %v98
    %v248 = vunpack.c.l.b16 %v99
    %v249 = vunpack.c.l.b16 %v100
    %v250 = vunpack.c.l.b16 %v101
    %v251 = vunpack.c.l.b16 %v102
    %v252 = vunpack.c.l.b16 %v103
    %v253 = vunpack.c.l.b16 %v104
    %v254 = vunpack.c.l.b16 %v105
    %v255 = vunpack.c.l.b16 %v106
    %v256 = vunpack.c.l.b16 %v107
    %v257 = vpack.c.b16 %v194, %v193
    %v258 = vpack.c.b16 %v196, %v195
    %v259 = vpack.c.b16 %v198, %v197
    %v260 = vpack.c.b16 %v200, %v199
    %v261 = vpack.c.b16 %v202, %v201
    %v262 = vpack.c.b16 %v204, %v203
    %v263 = vpack.c.b16 %v206, %v205
    %v264 = vpack.c.b16 %v208, %v207
    %v265 = vpack.c.b16 %v210, %v209
    %v266 = vpack.c.b16 %v212, %v211
    %v267 = vpack.c.b16 %v214, %v213
    %v268 = vpack.c.b16 %v216, %v215
    %v269 = vpack.c.b16 %v218, %v217
    %v270 = vpack.c.b16 %v220, %v219
    %v271 = vpack.c.b16 %v222, %v221
    %v272 = vpack.c.b16 %v224, %v223
    %v273 = vpack.c.b16 %v226, %v225
    %v274 = vpack.c.b16 %v228, %v227
    %v275 = vpack.c.b16 %v230, %v229
    %v276 = vpack.c.b16 %v232, %v231
    %v277 = vpack.c.b16 %v234, %v233
    %v278 = vpack.c.b16 %v236, %v235
    %v279 = vpack.c.b16 %v238, %v237
    %v280 = vpack.c.b16 %v240, %v239
    %v281 = vpack.c.b16 %v242, %v241
    %v282 = vpack.c.b16 %v244, %v243
    %v283 = vpack.c.b16 %v246, %v245
    %v284 = vpack.c.b16 %v248, %v247
    %v285 = vpack.c.b16 %v250, %v249
    %v286 = vpack.c.b16 %v252, %v251
    %v287 = vpack.c.b16 %v254, %v253
    %v288 = vpack.c.b16 %v256, %v255
    %v337 = vunpack.c.l.b16 %v108
    %v338 = vunpack.c.l.b16 %v109
    %v339 = vunpack.c.l.b16 %v110
    %v340 = vunpack.c.l.b16 %v111
    %v341 = vunpack.c.l.b16 %v112
    %v342 = vunpack.c.l.b16 %v113
    %v343 = vunpack.c.l.b16 %v114
    %v344 = vunpack.c.l.b16 %v115
    %v345 = vunpack.c.l.b16 %v116
    %v346 = vunpack.c.l.b16 %v117
    %v347 = vunpack.c.l.b16 %v118
    %v348 = vunpack.c.l.b16 %v119
    %v349 = vunpack.c.l.b16 %v120
    %v350 = vunpack.c.l.b16 %v121
    %v351 = vunpack.c.l.b16 %v122
    %v352 = vunpack.c.l.b16 %v123
    %v353 = vpack.c.b16 %v338, %v337
    %v354 = vpack.c.b16 %v340, %v339
    %v355 = vpack.c.b16 %v342, %v341
    %v356 = vpack.c.b16 %v344, %v343
    %v357 = vpack.c.b16 %v346, %v345
    %v358 = vpack.c.b16 %v348, %v347
    %v359 = vpack.c.b16 %v350, %v349
    %v360 = vpack.c.b16 %v352, %v351
    %369 = vmatprep.subr.bf16.mxu0 0
    %370 = vmatpush1.bf16.msra.mxu0 %v353
    %371 = vmatprep.subr.bf16.mxu0 0
    %372 = vmatpush1.bf16.msra.mxu0 %v354
    %373 = vmatprep.subr.bf16.mxu0 0
    %374 = vmatpush1.bf16.msra.mxu0 %v355
    %375 = vmatprep.subr.bf16.mxu0 0
    %376 = vmatpush1.bf16.msra.mxu0 %v356
    %377 = vmatprep.subr.bf16.mxu0 0
    %378 = vmatpush1.bf16.msra.mxu0 %v357
    %379 = vmatprep.subr.bf16.mxu0 0
    %380 = vmatpush1.bf16.msra.mxu0 %v358
    %381 = vmatprep.subr.bf16.mxu0 0
    %382 = vmatpush1.bf16.msra.mxu0 %v359
    %383 = vmatprep.subr.bf16.mxu0 0
    %384 = vmatpush1.bf16.msra.mxu0 %v360
    %385 = vmatprep.subr.bf16.mxu0 0
    %386 = vmatpush1.bf16.msra.mxu0 0
    %387 = vmatprep.subr.bf16.mxu0 0
    %388 = vmatpush1.bf16.msra.mxu0 0
    %389 = vmatprep.subr.bf16.mxu0 0
    %390 = vmatpush1.bf16.msra.mxu0 0
    %391 = vmatprep.subr.bf16.mxu0 0
    %392 = vmatpush1.bf16.msra.mxu0 0
    %393 = vmatprep.subr.bf16.mxu0 0
    %394 = vmatpush1.bf16.msra.mxu0 0
    %395 = vmatprep.subr.bf16.mxu0 0
    %396 = vmatpush1.bf16.msra.mxu0 0
    %397 = vmatprep.subr.bf16.mxu0 0
    %398 = vmatpush1.bf16.msra.mxu0 0
    %399 = vmatprep.subr.bf16.mxu0 0
    %400 = vmatpush1.bf16.msra.mxu0 0
    %401 = vmatprep.mubr.bf16.mxu0 0
    %402 = vmatmul.mubr.bf16.gmra.mrb[0].mxu0 %v257
    %v403 = vpop.f32.mrb[0].mxu0
    %v404 = vadd.f32 %v128, %v403
    %v405 = vpop.f32.mrb[0].mxu0
    %v406 = vpop.f32.mrb[0].mxu0
    %v407 = vadd.f32 %v128, %v406
    %v408 = vpop.f32.mrb[0].mxu0
    %409 = vmatprep.mubr.bf16.mxu0 0
    %410 = vmatmul.mubr.bf16.gmra.mrb[0].mxu0 %v258
    %v411 = vpop.f32.mrb[0].mxu0
    %v412 = vadd.f32 %v128, %v411
    %v413 = vpop.f32.mrb[0].mxu0
    %v414 = vpop.f32.mrb[0].mxu0
    %v415 = vadd.f32 %v128, %v414
    %v416 = vpop.f32.mrb[0].mxu0
    %417 = vmatprep.mubr.bf16.mxu0 0
    %418 = vmatmul.mubr.bf16.gmra.mrb[0].mxu0 %v259
    %v419 = vpop.f32.mrb[0].mxu0
    %v420 = vadd.f32 %v128, %v419
    %v421 = vpop.f32.mrb[0].mxu0
    %v422 = vpop.f32.mrb[0].mxu0
    %v423 = vadd.f32 %v128, %v422
    %v424 = vpop.f32.mrb[0].mxu0
    %425 = vmatprep.mubr.bf16.mxu0 0
    %426 = vmatmul.mubr.bf16.gmra.mrb[0].mxu0 %v260
    %v427 = vpop.f32.mrb[0].mxu0
    %v428 = vadd.f32 %v128, %v427
    %v429 = vpop.f32.mrb[0].mxu0
    %v430 = vpop.f32.mrb[0].mxu0
    %v431 = vadd.f32 %v128, %v430
    %v432 = vpop.f32.mrb[0].mxu0
    %433 = vmatprep.mubr.bf16.mxu0 0
    %434 = vmatmul.mubr.bf16.gmra.mrb[0].mxu0 %v261
    %v435 = vpop.f32.mrb[0].mxu0
    %v436 = vadd.f32 %v128, %v435
    %v437 = vpop.f32.mrb[0].mxu0
    %v438 = vpop.f32.mrb[0].mxu0
    %v439 = vadd.f32 %v128, %v438
    %v440 = vpop.f32.mrb[0].mxu0
    %441 = vmatprep.mubr.bf16.mxu0 0
    %442 = vmatmul.mubr.bf16.gmra.mrb[0].mxu0 %v262
    %v443 = vpop.f32.mrb[0].mxu0
    %v444 = vadd.f32 %v128, %v443
    %v445 = vpop.f32.mrb[0].mxu0
    %v446 = vpop.f32.mrb[0].mxu0
    %v447 = vadd.f32 %v128, %v446
    %v448 = vpop.f32.mrb[0].mxu0
    %449 = vmatprep.mubr.bf16.mxu0 0
    %450 = vmatmul.mubr.bf16.gmra.mrb[0].mxu0 %v263
    %v451 = vpop.f32.mrb[0].mxu0
    %v452 = vadd.f32 %v128, %v451
    %v453 = vpop.f32.mrb[0].mxu0
    %v454 = vpop.f32.mrb[0].mxu0
    %v455 = vadd.f32 %v128, %v454
    %v456 = vpop.f32.mrb[0].mxu0
    %457 = vmatprep.mubr.bf16.mxu0 0
    %458 = vmatmul.mubr.bf16.gmra.mrb[0].mxu0 %v264
    %v459 = vpop.f32.mrb[0].mxu0
    %v460 = vadd.f32 %v128, %v459
    %v461 = vpop.f32.mrb[0].mxu0
    %v462 = vpop.f32.mrb[0].mxu0
    %v463 = vadd.f32 %v128, %v462
    %v464 = vpop.f32.mrb[0].mxu0
    %465 = vmatprep.mubr.bf16.mxu0 0
    %466 = vmatmul.mubr.bf16.gmra.mrb[0].mxu0 %v265
    %v467 = vpop.f32.mrb[0].mxu0
    %v468 = vadd.f32 %v128, %v467
    %v469 = vpop.f32.mrb[0].mxu0
    %v470 = vpop.f32.mrb[0].mxu0
    %v471 = vadd.f32 %v128, %v470
    %v472 = vpop.f32.mrb[0].mxu0
    %473 = vmatprep.mubr.bf16.mxu0 0
    %474 = vmatmul.mubr.bf16.gmra.mrb[0].mxu0 %v266
    %v475 = vpop.f32.mrb[0].mxu0
    %v476 = vadd.f32 %v128, %v475
    %v477 = vpop.f32.mrb[0].mxu0
    %v478 = vpop.f32.mrb[0].mxu0
    %v479 = vadd.f32 %v128, %v478
    %v480 = vpop.f32.mrb[0].mxu0
    %481 = vmatprep.mubr.bf16.mxu0 0
    %482 = vmatmul.mubr.bf16.gmra.mrb[0].mxu0 %v267
    %v483 = vpop.f32.mrb[0].mxu0
    %v484 = vadd.f32 %v128, %v483
    %v485 = vpop.f32.mrb[0].mxu0
    %v486 = vpop.f32.mrb[0].mxu0
    %v487 = vadd.f32 %v128, %v486
    %v488 = vpop.f32.mrb[0].mxu0
    %489 = vmatprep.mubr.bf16.mxu0 0
    %490 = vmatmul.mubr.bf16.gmra.mrb[0].mxu0 %v268
    %v491 = vpop.f32.mrb[0].mxu0
    %v492 = vadd.f32 %v128, %v491
    %v493 = vpop.f32.mrb[0].mxu0
    %v494 = vpop.f32.mrb[0].mxu0
    %v495 = vadd.f32 %v128, %v494
    %v496 = vpop.f32.mrb[0].mxu0
    %497 = vmatprep.mubr.bf16.mxu0 0
    %498 = vmatmul.mubr.bf16.gmra.mrb[0].mxu0 %v269
    %v499 = vpop.f32.mrb[0].mxu0
    %v500 = vadd.f32 %v128, %v499
    %v501 = vpop.f32.mrb[0].mxu0
    %v502 = vpop.f32.mrb[0].mxu0
    %v503 = vadd.f32 %v128, %v502
    %v504 = vpop.f32.mrb[0].mxu0
    %505 = vmatprep.mubr.bf16.mxu0 0
    %506 = vmatmul.mubr.bf16.gmra.mrb[0].mxu0 %v270
    %v507 = vpop.f32.mrb[0].mxu0
    %v508 = vadd.f32 %v128, %v507
    %v509 = vpop.f32.mrb[0].mxu0
    %v510 = vpop.f32.mrb[0].mxu0
    %v511 = vadd.f32 %v128, %v510
    %v512 = vpop.f32.mrb[0].mxu0
    %513 = vmatprep.mubr.bf16.mxu0 0
    %514 = vmatmul.mubr.bf16.gmra.mrb[0].mxu0 %v271
    %v515 = vpop.f32.mrb[0].mxu0
    %v516 = vadd.f32 %v128, %v515
    %v517 = vpop.f32.mrb[0].mxu0
    %v518 = vpop.f32.mrb[0].mxu0
    %v519 = vadd.f32 %v128, %v518
    %v520 = vpop.f32.mrb[0].mxu0
    %521 = vmatprep.mubr.bf16.mxu0 0
    %522 = vmatmul.mubr.bf16.gmra.mrb[0].mxu0 %v272
    %v523 = vpop.f32.mrb[0].mxu0
    %v524 = vadd.f32 %v128, %v523
    %v525 = vpop.f32.mrb[0].mxu0
    %v526 = vpop.f32.mrb[0].mxu0
    %v527 = vadd.f32 %v128, %v526
    %v528 = vpop.f32.mrb[0].mxu0
    %529 = vmatprep.mubr.bf16.mxu0 0
    %530 = vmatmul.mubr.bf16.gmra.mrb[0].mxu0 %v273
    %v531 = vpop.f32.mrb[0].mxu0
    %v532 = vadd.f32 %v128, %v531
    %v533 = vpop.f32.mrb[0].mxu0
    %v534 = vpop.f32.mrb[0].mxu0
    %v535 = vadd.f32 %v128, %v534
    %v536 = vpop.f32.mrb[0].mxu0
    %537 = vmatprep.mubr.bf16.mxu0 0
    %538 = vmatmul.mubr.bf16.gmra.mrb[0].mxu0 %v274
    %v539 = vpop.f32.mrb[0].mxu0
    %v540 = vadd.f32 %v128, %v539
    %v541 = vpop.f32.mrb[0].mxu0
    %v542 = vpop.f32.mrb[0].mxu0
    %v543 = vadd.f32 %v128, %v542
    %v544 = vpop.f32.mrb[0].mxu0
    %545 = vmatprep.mubr.bf16.mxu0 0
    %546 = vmatmul.mubr.bf16.gmra.mrb[0].mxu0 %v275
    %v547 = vpop.f32.mrb[0].mxu0
    %v548 = vadd.f32 %v128, %v547
    %v549 = vpop.f32.mrb[0].mxu0
    %v550 = vpop.f32.mrb[0].mxu0
    %v551 = vadd.f32 %v128, %v550
    %v552 = vpop.f32.mrb[0].mxu0
    %553 = vmatprep.mubr.bf16.mxu0 0
    %554 = vmatmul.mubr.bf16.gmra.mrb[0].mxu0 %v276
    %v555 = vpop.f32.mrb[0].mxu0
    %v556 = vadd.f32 %v128, %v555
    %v557 = vpop.f32.mrb[0].mxu0
    %v558 = vpop.f32.mrb[0].mxu0
    %v559 = vadd.f32 %v128, %v558
    %v560 = vpop.f32.mrb[0].mxu0
    %561 = vmatprep.mubr.bf16.mxu0 0
    %562 = vmatmul.mubr.bf16.gmra.mrb[0].mxu0 %v277
    %v563 = vpop.f32.mrb[0].mxu0
    %v564 = vadd.f32 %v128, %v563
    %v565 = vpop.f32.mrb[0].mxu0
    %v566 = vpop.f32.mrb[0].mxu0
    %v567 = vadd.f32 %v128, %v566
    %v568 = vpop.f32.mrb[0].mxu0
    %569 = vmatprep.mubr.bf16.mxu0 0
    %570 = vmatmul.mubr.bf16.gmra.mrb[0].mxu0 %v278
    %v571 = vpop.f32.mrb[0].mxu0
    %v572 = vadd.f32 %v128, %v571
    %v573 = vpop.f32.mrb[0].mxu0
    %v574 = vpop.f32.mrb[0].mxu0
    %v575 = vadd.f32 %v128, %v574
    %v576 = vpop.f32.mrb[0].mxu0
    %577 = vmatprep.mubr.bf16.mxu0 0
    %578 = vmatmul.mubr.bf16.gmra.mrb[0].mxu0 %v279
    %v579 = vpop.f32.mrb[0].mxu0
    %v580 = vadd.f32 %v128, %v579
    %v581 = vpop.f32.mrb[0].mxu0
    %v582 = vpop.f32.mrb[0].mxu0
    %v583 = vadd.f32 %v128, %v582
    %v584 = vpop.f32.mrb[0].mxu0
    %585 = vmatprep.mubr.bf16.mxu0 0
    %586 = vmatmul.mubr.bf16.gmra.mrb[0].mxu0 %v280
    %v587 = vpop.f32.mrb[0].mxu0
    %v588 = vadd.f32 %v128, %v587
    %v589 = vpop.f32.mrb[0].mxu0
    %v590 = vpop.f32.mrb[0].mxu0
    %v591 = vadd.f32 %v128, %v590
    %v592 = vpop.f32.mrb[0].mxu0
    %593 = vmatprep.mubr.bf16.mxu0 0
    %594 = vmatmul.mubr.bf16.gmra.mrb[0].mxu0 %v281
    %v595 = vpop.f32.mrb[0].mxu0
    %v596 = vadd.f32 %v128, %v595
    %v597 = vpop.f32.mrb[0].mxu0
    %v598 = vpop.f32.mrb[0].mxu0
    %v599 = vadd.f32 %v128, %v598
    %v600 = vpop.f32.mrb[0].mxu0
    %601 = vmatprep.mubr.bf16.mxu0 0
    %602 = vmatmul.mubr.bf16.gmra.mrb[0].mxu0 %v282
    %v603 = vpop.f32.mrb[0].mxu0
    %v604 = vadd.f32 %v128, %v603
    %v605 = vpop.f32.mrb[0].mxu0
    %v606 = vpop.f32.mrb[0].mxu0
    %v607 = vadd.f32 %v128, %v606
    %v608 = vpop.f32.mrb[0].mxu0
    %609 = vmatprep.mubr.bf16.mxu0 0
    %610 = vmatmul.mubr.bf16.gmra.mrb[0].mxu0 %v283
    %v611 = vpop.f32.mrb[0].mxu0
    %v612 = vadd.f32 %v128, %v611
    %v613 = vpop.f32.mrb[0].mxu0
    %v614 = vpop.f32.mrb[0].mxu0
    %v615 = vadd.f32 %v128, %v614
    %v616 = vpop.f32.mrb[0].mxu0
    %617 = vmatprep.mubr.bf16.mxu0 0
    %618 = vmatmul.mubr.bf16.gmra.mrb[0].mxu0 %v284
    %v619 = vpop.f32.mrb[0].mxu0
    %v620 = vadd.f32 %v128, %v619
    %v621 = vpop.f32.mrb[0].mxu0
    %v622 = vpop.f32.mrb[0].mxu0
    %v623 = vadd.f32 %v128, %v622
    %v624 = vpop.f32.mrb[0].mxu0
    %625 = vmatprep.mubr.bf16.mxu0 0
    %626 = vmatmul.mubr.bf16.gmra.mrb[0].mxu0 %v285
    %v627 = vpop.f32.mrb[0].mxu0
    %v628 = vadd.f32 %v128, %v627
    %v629 = vpop.f32.mrb[0].mxu0
    %v630 = vpop.f32.mrb[0].mxu0
    %v631 = vadd.f32 %v128, %v630
    %v632 = vpop.f32.mrb[0].mxu0
    %633 = vmatprep.mubr.bf16.mxu0 0
    %634 = vmatmul.mubr.bf16.gmra.mrb[0].mxu0 %v286
    %v635 = vpop.f32.mrb[0].mxu0
    %v636 = vadd.f32 %v128, %v635
    %v637 = vpop.f32.mrb[0].mxu0
    %v638 = vpop.f32.mrb[0].mxu0
    %v639 = vadd.f32 %v128, %v638
    %v640 = vpop.f32.mrb[0].mxu0
    %641 = vmatprep.mubr.bf16.mxu0 0
    %642 = vmatmul.mubr.bf16.gmra.mrb[0].mxu0 %v287
    %v643 = vpop.f32.mrb[0].mxu0
    %v644 = vadd.f32 %v128, %v643
    %v645 = vpop.f32.mrb[0].mxu0
    %v646 = vpop.f32.mrb[0].mxu0
    %v647 = vadd.f32 %v128, %v646
    %v648 = vpop.f32.mrb[0].mxu0
    %649 = vmatprep.mubr.bf16.mxu0 0
    %650 = vmatmul.mubr.bf16.gmra.mrb[0].mxu0 %v288
    %v651 = vpop.f32.mrb[0].mxu0
    %v652 = vadd.f32 %v128, %v651
    %v653 = vpop.f32.mrb[0].mxu0
    %v654 = vpop.f32.mrb[0].mxu0
    %v655 = vadd.f32 %v128, %v654
    %v656 = vpop.f32.mrb[0].mxu0
    %657 = vdwg.mxu0
    %v658 = vmul.f32 %v404, 0.5
    %v659 = vmul.f32 %v407, 0.5
    %v660 = vmul.f32 %v412, 0.5
    %v661 = vmul.f32 %v415, 0.5
    %v662 = vmul.f32 %v420, 0.5
    %v663 = vmul.f32 %v423, 0.5
    %v664 = vmul.f32 %v428, 0.5
    %v665 = vmul.f32 %v431, 0.5
    %v666 = vmul.f32 %v436, 0.5
    %v667 = vmul.f32 %v439, 0.5
    %v668 = vmul.f32 %v444, 0.5
    %v669 = vmul.f32 %v447, 0.5
    %v670 = vmul.f32 %v452, 0.5
    %v671 = vmul.f32 %v455, 0.5
    %v672 = vmul.f32 %v460, 0.5
    %v673 = vmul.f32 %v463, 0.5
    %v674 = vmul.f32 %v468, 0.5
    %v675 = vmul.f32 %v471, 0.5
    %v676 = vmul.f32 %v476, 0.5
    %v677 = vmul.f32 %v479, 0.5
    %v678 = vmul.f32 %v484, 0.5
    %v679 = vmul.f32 %v487, 0.5
    %v680 = vmul.f32 %v492, 0.5
    %v681 = vmul.f32 %v495, 0.5
    %v682 = vmul.f32 %v500, 0.5
    %v683 = vmul.f32 %v503, 0.5
    %v684 = vmul.f32 %v508, 0.5
    %v685 = vmul.f32 %v511, 0.5
    %v686 = vmul.f32 %v516, 0.5
    %v687 = vmul.f32 %v519, 0.5
    %v688 = vmul.f32 %v524, 0.5
    %v689 = vmul.f32 %v527, 0.5
    %v690 = vmul.f32 %v532, 0.5
    %v691 = vmul.f32 %v535, 0.5
    %v692 = vmul.f32 %v540, 0.5
    %v693 = vmul.f32 %v543, 0.5
    %v694 = vmul.f32 %v548, 0.5
    %v695 = vmul.f32 %v551, 0.5
    %v696 = vmul.f32 %v556, 0.5
    %v697 = vmul.f32 %v559, 0.5
    %v698 = vmul.f32 %v564, 0.5
    %v699 = vmul.f32 %v567, 0.5
    %v700 = vmul.f32 %v572, 0.5
    %v701 = vmul.f32 %v575, 0.5
    %v702 = vmul.f32 %v580, 0.5
    %v703 = vmul.f32 %v583, 0.5
    %v704 = vmul.f32 %v588, 0.5
    %v705 = vmul.f32 %v591, 0.5
    %v706 = vmul.f32 %v596, 0.5
    %v707 = vmul.f32 %v599, 0.5
    %v708 = vmul.f32 %v604, 0.5
    %v709 = vmul.f32 %v607, 0.5
    %v710 = vmul.f32 %v612, 0.5
    %v711 = vmul.f32 %v615, 0.5
    %v712 = vmul.f32 %v620, 0.5
    %v713 = vmul.f32 %v623, 0.5
    %v714 = vmul.f32 %v628, 0.5
    %v715 = vmul.f32 %v631, 0.5
    %v716 = vmul.f32 %v636, 0.5
    %v717 = vmul.f32 %v639, 0.5
    %v718 = vmul.f32 %v644, 0.5
    %v719 = vmul.f32 %v647, 0.5
    %v720 = vmul.f32 %v652, 0.5
    %v721 = vmul.f32 %v655, 0.5
    %v722 = vmul.f32 %v404, 0.044715
    %v723 = vmul.f32 %v407, 0.044715
    %v724 = vmul.f32 %v412, 0.044715
    %v725 = vmul.f32 %v415, 0.044715
    %v726 = vmul.f32 %v420, 0.044715
    %v727 = vmul.f32 %v423, 0.044715
    %v728 = vmul.f32 %v428, 0.044715
    %v729 = vmul.f32 %v431, 0.044715
    %v730 = vmul.f32 %v436, 0.044715
    %v731 = vmul.f32 %v439, 0.044715
    %v732 = vmul.f32 %v444, 0.044715
    %v733 = vmul.f32 %v447, 0.044715
    %v734 = vmul.f32 %v452, 0.044715
    %v735 = vmul.f32 %v455, 0.044715
    %v736 = vmul.f32 %v460, 0.044715
    %v737 = vmul.f32 %v463, 0.044715
    %v738 = vmul.f32 %v468, 0.044715
    %v739 = vmul.f32 %v471, 0.044715
    %v740 = vmul.f32 %v476, 0.044715
    %v741 = vmul.f32 %v479, 0.044715
    %v742 = vmul.f32 %v484, 0.044715
    %v743 = vmul.f32 %v487, 0.044715
    %v744 = vmul.f32 %v492, 0.044715
    %v745 = vmul.f32 %v495, 0.044715
    %v746 = vmul.f32 %v500, 0.044715
    %v747 = vmul.f32 %v503, 0.044715
    %v748 = vmul.f32 %v508, 0.044715
    %v749 = vmul.f32 %v511, 0.044715
    %v750 = vmul.f32 %v516, 0.044715
    %v751 = vmul.f32 %v519, 0.044715
    %v752 = vmul.f32 %v524, 0.044715
    %v753 = vmul.f32 %v527, 0.044715
    %v754 = vmul.f32 %v532, 0.044715
    %v755 = vmul.f32 %v535, 0.044715
    %v756 = vmul.f32 %v540, 0.044715
    %v757 = vmul.f32 %v543, 0.044715
    %v758 = vmul.f32 %v548, 0.044715
    %v759 = vmul.f32 %v551, 0.044715
    %v760 = vmul.f32 %v556, 0.044715
    %v761 = vmul.f32 %v559, 0.044715
    %v762 = vmul.f32 %v564, 0.044715
    %v763 = vmul.f32 %v567, 0.044715
    %v764 = vmul.f32 %v572, 0.044715
    %v765 = vmul.f32 %v575, 0.044715
    %v766 = vmul.f32 %v580, 0.044715
    %v767 = vmul.f32 %v583, 0.044715
    %v768 = vmul.f32 %v588, 0.044715
    %v769 = vmul.f32 %v591, 0.044715
    %v770 = vmul.f32 %v596, 0.044715
    %v771 = vmul.f32 %v599, 0.044715
    %v772 = vmul.f32 %v604, 0.044715
    %v773 = vmul.f32 %v607, 0.044715
    %v774 = vmul.f32 %v612, 0.044715
    %v775 = vmul.f32 %v615, 0.044715
    %v776 = vmul.f32 %v620, 0.044715
    %v777 = vmul.f32 %v623, 0.044715
    %v778 = vmul.f32 %v628, 0.044715
    %v779 = vmul.f32 %v631, 0.044715
    %v780 = vmul.f32 %v636, 0.044715
    %v781 = vmul.f32 %v639, 0.044715
    %v782 = vmul.f32 %v644, 0.044715
    %v783 = vmul.f32 %v647, 0.044715
    %v784 = vmul.f32 %v652, 0.044715
    %v785 = vmul.f32 %v655, 0.044715
    %v786 = vmul.f32 %v722, %v404
    %v787 = vmul.f32 %v723, %v407
    %v788 = vmul.f32 %v724, %v412
    %v789 = vmul.f32 %v725, %v415
    %v790 = vmul.f32 %v726, %v420
    %v791 = vmul.f32 %v727, %v423
    %v792 = vmul.f32 %v728, %v428
    %v793 = vmul.f32 %v729, %v431
    %v794 = vmul.f32 %v730, %v436
    %v795 = vmul.f32 %v731, %v439
    %v796 = vmul.f32 %v732, %v444
    %v797 = vmul.f32 %v733, %v447
    %v798 = vmul.f32 %v734, %v452
    %v799 = vmul.f32 %v735, %v455
    %v800 = vmul.f32 %v736, %v460
    %v801 = vmul.f32 %v737, %v463
    %v802 = vmul.f32 %v738, %v468
    %v803 = vmul.f32 %v739, %v471
    %v804 = vmul.f32 %v740, %v476
    %v805 = vmul.f32 %v741, %v479
    %v806 = vmul.f32 %v742, %v484
    %v807 = vmul.f32 %v743, %v487
    %v808 = vmul.f32 %v744, %v492
    %v809 = vmul.f32 %v745, %v495
    %v810 = vmul.f32 %v746, %v500
    %v811 = vmul.f32 %v747, %v503
    %v812 = vmul.f32 %v748, %v508
    %v813 = vmul.f32 %v749, %v511
    %v814 = vmul.f32 %v750, %v516
    %v815 = vmul.f32 %v751, %v519
    %v816 = vmul.f32 %v752, %v524
    %v817 = vmul.f32 %v753, %v527
    %v818 = vmul.f32 %v754, %v532
    %v819 = vmul.f32 %v755, %v535
    %v820 = vmul.f32 %v756, %v540
    %v821 = vmul.f32 %v757, %v543
    %v822 = vmul.f32 %v758, %v548
    %v823 = vmul.f32 %v759, %v551
    %v824 = vmul.f32 %v760, %v556
    %v825 = vmul.f32 %v761, %v559
    %v826 = vmul.f32 %v762, %v564
    %v827 = vmul.f32 %v763, %v567
    %v828 = vmul.f32 %v764, %v572
    %v829 = vmul.f32 %v765, %v575
    %v830 = vmul.f32 %v766, %v580
    %v831 = vmul.f32 %v767, %v583
    %v832 = vmul.f32 %v768, %v588
    %v833 = vmul.f32 %v769, %v591
    %v834 = vmul.f32 %v770, %v596
    %v835 = vmul.f32 %v771, %v599
    %v836 = vmul.f32 %v772, %v604
    %v837 = vmul.f32 %v773, %v607
    %v838 = vmul.f32 %v774, %v612
    %v839 = vmul.f32 %v775, %v615
    %v840 = vmul.f32 %v776, %v620
    %v841 = vmul.f32 %v777, %v623
    %v842 = vmul.f32 %v778, %v628
    %v843 = vmul.f32 %v779, %v631
    %v844 = vmul.f32 %v780, %v636
    %v845 = vmul.f32 %v781, %v639
    %v846 = vmul.f32 %v782, %v644
    %v847 = vmul.f32 %v783, %v647
    %v848 = vmul.f32 %v784, %v652
    %v849 = vmul.f32 %v785, %v655
    %v850 = vmul.f32 %v786, %v404
    %v851 = vmul.f32 %v787, %v407
    %v852 = vmul.f32 %v788, %v412
    %v853 = vmul.f32 %v789, %v415
    %v854 = vmul.f32 %v790, %v420
    %v855 = vmul.f32 %v791, %v423
    %v856 = vmul.f32 %v792, %v428
    %v857 = vmul.f32 %v793, %v431
    %v858 = vmul.f32 %v794, %v436
    %v859 = vmul.f32 %v795, %v439
    %v860 = vmul.f32 %v796, %v444
    %v861 = vmul.f32 %v797, %v447
    %v862 = vmul.f32 %v798, %v452
    %v863 = vmul.f32 %v799, %v455
    %v864 = vmul.f32 %v800, %v460
    %v865 = vmul.f32 %v801, %v463
    %v866 = vmul.f32 %v802, %v468
    %v867 = vmul.f32 %v803, %v471
    %v868 = vmul.f32 %v804, %v476
    %v869 = vmul.f32 %v805, %v479
    %v870 = vmul.f32 %v806, %v484
    %v871 = vmul.f32 %v807, %v487
    %v872 = vmul.f32 %v808, %v492
    %v873 = vmul.f32 %v809, %v495
    %v874 = vmul.f32 %v810, %v500
    %v875 = vmul.f32 %v811, %v503
    %v876 = vmul.f32 %v812, %v508
    %v877 = vmul.f32 %v813, %v511
    %v878 = vmul.f32 %v814, %v516
    %v879 = vmul.f32 %v815, %v519
    %v880 = vmul.f32 %v816, %v524
    %v881 = vmul.f32 %v817, %v527
    %v882 = vmul.f32 %v818, %v532
    %v883 = vmul.f32 %v819, %v535
    %v884 = vmul.f32 %v820, %v540
    %v885 = vmul.f32 %v821, %v543
    %v886 = vmul.f32 %v822, %v548
    %v887 = vmul.f32 %v823, %v551
    %v888 = vmul.f32 %v824, %v556
    %v889 = vmul.f32 %v825, %v559
    %v890 = vmul.f32 %v826, %v564
    %v891 = vmul.f32 %v827, %v567
    %v892 = vmul.f32 %v828, %v572
    %v893 = vmul.f32 %v829, %v575
    %v894 = vmul.f32 %v830, %v580
    %v895 = vmul.f32 %v831, %v583
    %v896 = vmul.f32 %v832, %v588
    %v897 = vmul.f32 %v833, %v591
    %v898 = vmul.f32 %v834, %v596
    %v899 = vmul.f32 %v835, %v599
    %v900 = vmul.f32 %v836, %v604
    %v901 = vmul.f32 %v837, %v607
    %v902 = vmul.f32 %v838, %v612
    %v903 = vmul.f32 %v839, %v615
    %v904 = vmul.f32 %v840, %v620
    %v905 = vmul.f32 %v841, %v623
    %v906 = vmul.f32 %v842, %v628
    %v907 = vmul.f32 %v843, %v631
    %v908 = vmul.f32 %v844, %v636
    %v909 = vmul.f32 %v845, %v639
    %v910 = vmul.f32 %v846, %v644
    %v911 = vmul.f32 %v847, %v647
    %v912 = vmul.f32 %v848, %v652
    %v913 = vmul.f32 %v849, %v655
    %v914 = vadd.f32 %v404, %v850
    %v915 = vadd.f32 %v407, %v851
    %v916 = vadd.f32 %v412, %v852
    %v917 = vadd.f32 %v415, %v853
    %v918 = vadd.f32 %v420, %v854
    %v919 = vadd.f32 %v423, %v855
    %v920 = vadd.f32 %v428, %v856
    %v921 = vadd.f32 %v431, %v857
    %v922 = vadd.f32 %v436, %v858
    %v923 = vadd.f32 %v439, %v859
    %v924 = vadd.f32 %v444, %v860
    %v925 = vadd.f32 %v447, %v861
    %v926 = vadd.f32 %v452, %v862
    %v927 = vadd.f32 %v455, %v863
    %v928 = vadd.f32 %v460, %v864
    %v929 = vadd.f32 %v463, %v865
    %v930 = vadd.f32 %v468, %v866
    %v931 = vadd.f32 %v471, %v867
    %v932 = vadd.f32 %v476, %v868
    %v933 = vadd.f32 %v479, %v869
    %v934 = vadd.f32 %v484, %v870
    %v935 = vadd.f32 %v487, %v871
    %v936 = vadd.f32 %v492, %v872
    %v937 = vadd.f32 %v495, %v873
    %v938 = vadd.f32 %v500, %v874
    %v939 = vadd.f32 %v503, %v875
    %v940 = vadd.f32 %v508, %v876
    %v941 = vadd.f32 %v511, %v877
    %v942 = vadd.f32 %v516, %v878
    %v943 = vadd.f32 %v519, %v879
    %v944 = vadd.f32 %v524, %v880
    %v945 = vadd.f32 %v527, %v881
    %v946 = vadd.f32 %v532, %v882
    %v947 = vadd.f32 %v535, %v883
    %v948 = vadd.f32 %v540, %v884
    %v949 = vadd.f32 %v543, %v885
    %v950 = vadd.f32 %v548, %v886
    %v951 = vadd.f32 %v551, %v887
    %v952 = vadd.f32 %v556, %v888
    %v953 = vadd.f32 %v559, %v889
    %v954 = vadd.f32 %v564, %v890
    %v955 = vadd.f32 %v567, %v891
    %v956 = vadd.f32 %v572, %v892
    %v957 = vadd.f32 %v575, %v893
    %v958 = vadd.f32 %v580, %v894
    %v959 = vadd.f32 %v583, %v895
    %v960 = vadd.f32 %v588, %v896
    %v961 = vadd.f32 %v591, %v897
    %v962 = vadd.f32 %v596, %v898
    %v963 = vadd.f32 %v599, %v899
    %v964 = vadd.f32 %v604, %v900
    %v965 = vadd.f32 %v607, %v901
    %v966 = vadd.f32 %v612, %v902
    %v967 = vadd.f32 %v615, %v903
    %v968 = vadd.f32 %v620, %v904
    %v969 = vadd.f32 %v623, %v905
    %v970 = vadd.f32 %v628, %v906
    %v971 = vadd.f32 %v631, %v907
    %v972 = vadd.f32 %v636, %v908
    %v973 = vadd.f32 %v639, %v909
    %v974 = vadd.f32 %v644, %v910
    %v975 = vadd.f32 %v647, %v911
    %v976 = vadd.f32 %v652, %v912
    %v977 = vadd.f32 %v655, %v913
    %v978 = vmul.f32 %v914, 0.7978846
    %v979 = vmul.f32 %v915, 0.7978846
    %v980 = vmul.f32 %v916, 0.7978846
    %v981 = vmul.f32 %v917, 0.7978846
    %v982 = vmul.f32 %v918, 0.7978846
    %v983 = vmul.f32 %v919, 0.7978846
    %v984 = vmul.f32 %v920, 0.7978846
    %v985 = vmul.f32 %v921, 0.7978846
    %v986 = vmul.f32 %v922, 0.7978846
    %v987 = vmul.f32 %v923, 0.7978846
    %v988 = vmul.f32 %v924, 0.7978846
    %v989 = vmul.f32 %v925, 0.7978846
    %v990 = vmul.f32 %v926, 0.7978846
    %v991 = vmul.f32 %v927, 0.7978846
    %v992 = vmul.f32 %v928, 0.7978846
    %v993 = vmul.f32 %v929, 0.7978846
    %v994 = vmul.f32 %v930, 0.7978846
    %v995 = vmul.f32 %v931, 0.7978846
    %v996 = vmul.f32 %v932, 0.7978846
    %v997 = vmul.f32 %v933, 0.7978846
    %v998 = vmul.f32 %v934, 0.7978846
    %v999 = vmul.f32 %v935, 0.7978846
    %v1000 = vmul.f32 %v936, 0.7978846
    %v1001 = vmul.f32 %v937, 0.7978846
    %v1002 = vmul.f32 %v938, 0.7978846
    %v1003 = vmul.f32 %v939, 0.7978846
    %v1004 = vmul.f32 %v940, 0.7978846
    %v1005 = vmul.f32 %v941, 0.7978846
    %v1006 = vmul.f32 %v942, 0.7978846
    %v1007 = vmul.f32 %v943, 0.7978846
    %v1008 = vmul.f32 %v944, 0.7978846
    %v1009 = vmul.f32 %v945, 0.7978846
    %v1010 = vmul.f32 %v946, 0.7978846
    %v1011 = vmul.f32 %v947, 0.7978846
    %v1012 = vmul.f32 %v948, 0.7978846
    %v1013 = vmul.f32 %v949, 0.7978846
    %v1014 = vmul.f32 %v950, 0.7978846
    %v1015 = vmul.f32 %v951, 0.7978846
    %v1016 = vmul.f32 %v952, 0.7978846
    %v1017 = vmul.f32 %v953, 0.7978846
    %v1018 = vmul.f32 %v954, 0.7978846
    %v1019 = vmul.f32 %v955, 0.7978846
    %v1020 = vmul.f32 %v956, 0.7978846
    %v1021 = vmul.f32 %v957, 0.7978846
    %v1022 = vmul.f32 %v958, 0.7978846
    %v1023 = vmul.f32 %v959, 0.7978846
    %v1024 = vmul.f32 %v960, 0.7978846
    %v1025 = vmul.f32 %v961, 0.7978846
    %v1026 = vmul.f32 %v962, 0.7978846
    %v1027 = vmul.f32 %v963, 0.7978846
    %v1028 = vmul.f32 %v964, 0.7978846
    %v1029 = vmul.f32 %v965, 0.7978846
    %v1030 = vmul.f32 %v966, 0.7978846
    %v1031 = vmul.f32 %v967, 0.7978846
    %v1032 = vmul.f32 %v968, 0.7978846
    %v1033 = vmul.f32 %v969, 0.7978846
    %v1034 = vmul.f32 %v970, 0.7978846
    %v1035 = vmul.f32 %v971, 0.7978846
    %v1036 = vmul.f32 %v972, 0.7978846
    %v1037 = vmul.f32 %v973, 0.7978846
    %v1038 = vmul.f32 %v974, 0.7978846
    %v1039 = vmul.f32 %v975, 0.7978846
    %v1040 = vmul.f32 %v976, 0.7978846
    %v1041 = vmul.f32 %v977, 0.7978846
    %v1042 = vtanh.pop %v978
    %v1043 = vtanh.pop %v979
    %v1044 = vtanh.pop %v980
    %v1045 = vtanh.pop %v981
    %v1046 = vtanh.pop %v982
    %v1047 = vtanh.pop %v983
    %v1048 = vtanh.pop %v984
    %v1049 = vtanh.pop %v985
    %v1050 = vtanh.pop %v986
    %v1051 = vtanh.pop %v987
    %v1052 = vtanh.pop %v988
    %v1053 = vtanh.pop %v989
    %v1054 = vtanh.pop %v990
    %v1055 = vtanh.pop %v991
    %v1056 = vtanh.pop %v992
    %v1057 = vtanh.pop %v993
    %v1058 = vtanh.pop %v994
    %v1059 = vtanh.pop %v995
    %v1060 = vtanh.pop %v996
    %v1061 = vtanh.pop %v997
    %v1062 = vtanh.pop %v998
    %v1063 = vtanh.pop %v999
    %v1064 = vtanh.pop %v1000
    %v1065 = vtanh.pop %v1001
    %v1066 = vtanh.pop %v1002
    %v1067 = vtanh.pop %v1003
    %v1068 = vtanh.pop %v1004
    %v1069 = vtanh.pop %v1005
    %v1070 = vtanh.pop %v1006
    %v1071 = vtanh.pop %v1007
    %v1072 = vtanh.pop %v1008
    %v1073 = vtanh.pop %v1009
    %v1074 = vtanh.pop %v1010
    %v1075 = vtanh.pop %v1011
    %v1076 = vtanh.pop %v1012
    %v1077 = vtanh.pop %v1013
    %v1078 = vtanh.pop %v1014
    %v1079 = vtanh.pop %v1015
    %v1080 = vtanh.pop %v1016
    %v1081 = vtanh.pop %v1017
    %v1082 = vtanh.pop %v1018
    %v1083 = vtanh.pop %v1019
    %v1084 = vtanh.pop %v1020
    %v1085 = vtanh.pop %v1021
    %v1086 = vtanh.pop %v1022
    %v1087 = vtanh.pop %v1023
    %v1088 = vtanh.pop %v1024
    %v1089 = vtanh.pop %v1025
    %v1090 = vtanh.pop %v1026
    %v1091 = vtanh.pop %v1027
    %v1092 = vtanh.pop %v1028
    %v1093 = vtanh.pop %v1029
    %v1094 = vtanh.pop %v1030
    %v1095 = vtanh.pop %v1031
    %v1096 = vtanh.pop %v1032
    %v1097 = vtanh.pop %v1033
    %v1098 = vtanh.pop %v1034
    %v1099 = vtanh.pop %v1035
    %v1100 = vtanh.pop %v1036
    %v1101 = vtanh.pop %v1037
    %v1102 = vtanh.pop %v1038
    %v1103 = vtanh.pop %v1039
    %v1104 = vtanh.pop %v1040
    %v1105 = vtanh.pop %v1041
    %v1106 = vadd.f32 %v1042, 1.0
    %v1107 = vadd.f32 %v1043, 1.0
    %v1108 = vadd.f32 %v1044, 1.0
    %v1109 = vadd.f32 %v1045, 1.0
    %v1110 = vadd.f32 %v1046, 1.0
    %v1111 = vadd.f32 %v1047, 1.0
    %v1112 = vadd.f32 %v1048, 1.0
    %v1113 = vadd.f32 %v1049, 1.0
    %v1114 = vadd.f32 %v1050, 1.0
    %v1115 = vadd.f32 %v1051, 1.0
    %v1116 = vadd.f32 %v1052, 1.0
    %v1117 = vadd.f32 %v1053, 1.0
    %v1118 = vadd.f32 %v1054, 1.0
    %v1119 = vadd.f32 %v1055, 1.0
    %v1120 = vadd.f32 %v1056, 1.0
    %v1121 = vadd.f32 %v1057, 1.0
    %v1122 = vadd.f32 %v1058, 1.0
    %v1123 = vadd.f32 %v1059, 1.0
    %v1124 = vadd.f32 %v1060, 1.0
    %v1125 = vadd.f32 %v1061, 1.0
    %v1126 = vadd.f32 %v1062, 1.0
    %v1127 = vadd.f32 %v1063, 1.0
    %v1128 = vadd.f32 %v1064, 1.0
    %v1129 = vadd.f32 %v1065, 1.0
    %v1130 = vadd.f32 %v1066, 1.0
    %v1131 = vadd.f32 %v1067, 1.0
    %v1132 = vadd.f32 %v1068, 1.0
    %v1133 = vadd.f32 %v1069, 1.0
    %v1134 = vadd.f32 %v1070, 1.0
    %v1135 = vadd.f32 %v1071, 1.0
    %v1136 = vadd.f32 %v1072, 1.0
    %v1137 = vadd.f32 %v1073, 1.0
    %v1138 = vadd.f32 %v1074, 1.0
    %v1139 = vadd.f32 %v1075, 1.0
    %v1140 = vadd.f32 %v1076, 1.0
    %v1141 = vadd.f32 %v1077, 1.0
    %v1142 = vadd.f32 %v1078, 1.0
    %v1143 = vadd.f32 %v1079, 1.0
    %v1144 = vadd.f32 %v1080, 1.0
    %v1145 = vadd.f32 %v1081, 1.0
    %v1146 = vadd.f32 %v1082, 1.0
    %v1147 = vadd.f32 %v1083, 1.0
    %v1148 = vadd.f32 %v1084, 1.0
    %v1149 = vadd.f32 %v1085, 1.0
    %v1150 = vadd.f32 %v1086, 1.0
    %v1151 = vadd.f32 %v1087, 1.0
    %v1152 = vadd.f32 %v1088, 1.0
    %v1153 = vadd.f32 %v1089, 1.0
    %v1154 = vadd.f32 %v1090, 1.0
    %v1155 = vadd.f32 %v1091, 1.0
    %v1156 = vadd.f32 %v1092, 1.0
    %v1157 = vadd.f32 %v1093, 1.0
    %v1158 = vadd.f32 %v1094, 1.0
    %v1159 = vadd.f32 %v1095, 1.0
    %v1160 = vadd.f32 %v1096, 1.0
    %v1161 = vadd.f32 %v1097, 1.0
    %v1162 = vadd.f32 %v1098, 1.0
    %v1163 = vadd.f32 %v1099, 1.0
    %v1164 = vadd.f32 %v1100, 1.0
    %v1165 = vadd.f32 %v1101, 1.0
    %v1166 = vadd.f32 %v1102, 1.0
    %v1167 = vadd.f32 %v1103, 1.0
    %v1168 = vadd.f32 %v1104, 1.0
    %v1169 = vadd.f32 %v1105, 1.0
    %v1170 = vmul.f32 %v658, %v1106
    %v1171 = vmul.f32 %v659, %v1107
    %v1172 = vmul.f32 %v660, %v1108
    %v1173 = vmul.f32 %v661, %v1109
    %v1174 = vmul.f32 %v662, %v1110
    %v1175 = vmul.f32 %v663, %v1111
    %v1176 = vmul.f32 %v664, %v1112
    %v1177 = vmul.f32 %v665, %v1113
    %v1178 = vmul.f32 %v666, %v1114
    %v1179 = vmul.f32 %v667, %v1115
    %v1180 = vmul.f32 %v668, %v1116
    %v1181 = vmul.f32 %v669, %v1117
    %v1182 = vmul.f32 %v670, %v1118
    %v1183 = vmul.f32 %v671, %v1119
    %v1184 = vmul.f32 %v672, %v1120
    %v1185 = vmul.f32 %v673, %v1121
    %v1186 = vmul.f32 %v674, %v1122
    %v1187 = vmul.f32 %v675, %v1123
    %v1188 = vmul.f32 %v676, %v1124
    %v1189 = vmul.f32 %v677, %v1125
    %v1190 = vmul.f32 %v678, %v1126
    %v1191 = vmul.f32 %v679, %v1127
    %v1192 = vmul.f32 %v680, %v1128
    %v1193 = vmul.f32 %v681, %v1129
    %v1194 = vmul.f32 %v682, %v1130
    %v1195 = vmul.f32 %v683, %v1131
    %v1196 = vmul.f32 %v684, %v1132
    %v1197 = vmul.f32 %v685, %v1133
    %v1198 = vmul.f32 %v686, %v1134
    %v1199 = vmul.f32 %v687, %v1135
    %v1200 = vmul.f32 %v688, %v1136
    %v1201 = vmul.f32 %v689, %v1137
    %v1202 = vmul.f32 %v690, %v1138
    %v1203 = vmul.f32 %v691, %v1139
    %v1204 = vmul.f32 %v692, %v1140
    %v1205 = vmul.f32 %v693, %v1141
    %v1206 = vmul.f32 %v694, %v1142
    %v1207 = vmul.f32 %v695, %v1143
    %v1208 = vmul.f32 %v696, %v1144
    %v1209 = vmul.f32 %v697, %v1145
    %v1210 = vmul.f32 %v698, %v1146
    %v1211 = vmul.f32 %v699, %v1147
    %v1212 = vmul.f32 %v700, %v1148
    %v1213 = vmul.f32 %v701, %v1149
    %v1214 = vmul.f32 %v702, %v1150
    %v1215 = vmul.f32 %v703, %v1151
    %v1216 = vmul.f32 %v704, %v1152
    %v1217 = vmul.f32 %v705, %v1153
    %v1218 = vmul.f32 %v706, %v1154
    %v1219 = vmul.f32 %v707, %v1155
    %v1220 = vmul.f32 %v708, %v1156
    %v1221 = vmul.f32 %v709, %v1157
    %v1222 = vmul.f32 %v710, %v1158
    %v1223 = vmul.f32 %v711, %v1159
    %v1224 = vmul.f32 %v712, %v1160
    %v1225 = vmul.f32 %v713, %v1161
    %v1226 = vmul.f32 %v714, %v1162
    %v1227 = vmul.f32 %v715, %v1163
    %v1228 = vmul.f32 %v716, %v1164
    %v1229 = vmul.f32 %v717, %v1165
    %v1230 = vmul.f32 %v718, %v1166
    %v1231 = vmul.f32 %v719, %v1167
    %v1232 = vmul.f32 %v720, %v1168
    %v1233 = vmul.f32 %v721, %v1169
    %v1234 = vlaneseq
    %v1235 = vshrl.u32 %v1234, 7
    %v1236 = vsub.s32 1, %v1235
    %v1237 = vrot.slane %v124, %v1236
    %v1238 = vmul.f32 %v1170, %v1237
    %v1239 = vmul.f32 %v1171, %v1237
    %v1240 = vmul.f32 %v1172, %v1237
    %v1241 = vmul.f32 %v1173, %v1237
    %v1242 = vmul.f32 %v1174, %v1237
    %v1243 = vmul.f32 %v1175, %v1237
    %v1244 = vmul.f32 %v1176, %v1237
    %v1245 = vmul.f32 %v1177, %v1237
    %v1246 = vmul.f32 %v1178, %v1237
    %v1247 = vmul.f32 %v1179, %v1237
    %v1248 = vmul.f32 %v1180, %v1237
    %v1249 = vmul.f32 %v1181, %v1237
    %v1250 = vmul.f32 %v1182, %v1237
    %v1251 = vmul.f32 %v1183, %v1237
    %v1252 = vmul.f32 %v1184, %v1237
    %v1253 = vmul.f32 %v1185, %v1237
    %v1254 = vmul.f32 %v1186, %v1237
    %v1255 = vmul.f32 %v1187, %v1237
    %v1256 = vmul.f32 %v1188, %v1237
    %v1257 = vmul.f32 %v1189, %v1237
    %v1258 = vmul.f32 %v1190, %v1237
    %v1259 = vmul.f32 %v1191, %v1237
    %v1260 = vmul.f32 %v1192, %v1237
    %v1261 = vmul.f32 %v1193, %v1237
    %v1262 = vmul.f32 %v1194, %v1237
    %v1263 = vmul.f32 %v1195, %v1237
    %v1264 = vmul.f32 %v1196, %v1237
    %v1265 = vmul.f32 %v1197, %v1237
    %v1266 = vmul.f32 %v1198, %v1237
    %v1267 = vmul.f32 %v1199, %v1237
    %v1268 = vmul.f32 %v1200, %v1237
    %v1269 = vmul.f32 %v1201, %v1237
    %v1270 = vmul.f32 %v1202, %v1237
    %v1271 = vmul.f32 %v1203, %v1237
    %v1272 = vmul.f32 %v1204, %v1237
    %v1273 = vmul.f32 %v1205, %v1237
    %v1274 = vmul.f32 %v1206, %v1237
    %v1275 = vmul.f32 %v1207, %v1237
    %v1276 = vmul.f32 %v1208, %v1237
    %v1277 = vmul.f32 %v1209, %v1237
    %v1278 = vmul.f32 %v1210, %v1237
    %v1279 = vmul.f32 %v1211, %v1237
    %v1280 = vmul.f32 %v1212, %v1237
    %v1281 = vmul.f32 %v1213, %v1237
    %v1282 = vmul.f32 %v1214, %v1237
    %v1283 = vmul.f32 %v1215, %v1237
    %v1284 = vmul.f32 %v1216, %v1237
    %v1285 = vmul.f32 %v1217, %v1237
    %v1286 = vmul.f32 %v1218, %v1237
    %v1287 = vmul.f32 %v1219, %v1237
    %v1288 = vmul.f32 %v1220, %v1237
    %v1289 = vmul.f32 %v1221, %v1237
    %v1290 = vmul.f32 %v1222, %v1237
    %v1291 = vmul.f32 %v1223, %v1237
    %v1292 = vmul.f32 %v1224, %v1237
    %v1293 = vmul.f32 %v1225, %v1237
    %v1294 = vmul.f32 %v1226, %v1237
    %v1295 = vmul.f32 %v1227, %v1237
    %v1296 = vmul.f32 %v1228, %v1237
    %v1297 = vmul.f32 %v1229, %v1237
    %v1298 = vmul.f32 %v1230, %v1237
    %v1299 = vmul.f32 %v1231, %v1237
    %v1300 = vmul.f32 %v1232, %v1237
    %v1301 = vmul.f32 %v1233, %v1237
    %v1302 = vlaneseq
    %v1303 = vshrl.u32 %v1302, 7
    %v1304 = vsub.s32 2, %v1303
    %v1305 = vrot.slane %v124, %v1304
    %v1306 = vadd.f32 %v1238, %v1305
    %v1307 = vadd.f32 %v1239, %v1305
    %v1308 = vadd.f32 %v1240, %v1305
    %v1309 = vadd.f32 %v1241, %v1305
    %v1310 = vadd.f32 %v1242, %v1305
    %v1311 = vadd.f32 %v1243, %v1305
    %v1312 = vadd.f32 %v1244, %v1305
    %v1313 = vadd.f32 %v1245, %v1305
    %v1314 = vadd.f32 %v1246, %v1305
    %v1315 = vadd.f32 %v1247, %v1305
    %v1316 = vadd.f32 %v1248, %v1305
    %v1317 = vadd.f32 %v1249, %v1305
    %v1318 = vadd.f32 %v1250, %v1305
    %v1319 = vadd.f32 %v1251, %v1305
    %v1320 = vadd.f32 %v1252, %v1305
    %v1321 = vadd.f32 %v1253, %v1305
    %v1322 = vadd.f32 %v1254, %v1305
    %v1323 = vadd.f32 %v1255, %v1305
    %v1324 = vadd.f32 %v1256, %v1305
    %v1325 = vadd.f32 %v1257, %v1305
    %v1326 = vadd.f32 %v1258, %v1305
    %v1327 = vadd.f32 %v1259, %v1305
    %v1328 = vadd.f32 %v1260, %v1305
    %v1329 = vadd.f32 %v1261, %v1305
    %v1330 = vadd.f32 %v1262, %v1305
    %v1331 = vadd.f32 %v1263, %v1305
    %v1332 = vadd.f32 %v1264, %v1305
    %v1333 = vadd.f32 %v1265, %v1305
    %v1334 = vadd.f32 %v1266, %v1305
    %v1335 = vadd.f32 %v1267, %v1305
    %v1336 = vadd.f32 %v1268, %v1305
    %v1337 = vadd.f32 %v1269, %v1305
    %v1338 = vadd.f32 %v1270, %v1305
    %v1339 = vadd.f32 %v1271, %v1305
    %v1340 = vadd.f32 %v1272, %v1305
    %v1341 = vadd.f32 %v1273, %v1305
    %v1342 = vadd.f32 %v1274, %v1305
    %v1343 = vadd.f32 %v1275, %v1305
    %v1344 = vadd.f32 %v1276, %v1305
    %v1345 = vadd.f32 %v1277, %v1305
    %v1346 = vadd.f32 %v1278, %v1305
    %v1347 = vadd.f32 %v1279, %v1305
    %v1348 = vadd.f32 %v1280, %v1305
    %v1349 = vadd.f32 %v1281, %v1305
    %v1350 = vadd.f32 %v1282, %v1305
    %v1351 = vadd.f32 %v1283, %v1305
    %v1352 = vadd.f32 %v1284, %v1305
    %v1353 = vadd.f32 %v1285, %v1305
    %v1354 = vadd.f32 %v1286, %v1305
    %v1355 = vadd.f32 %v1287, %v1305
    %v1356 = vadd.f32 %v1288, %v1305
    %v1357 = vadd.f32 %v1289, %v1305
    %v1358 = vadd.f32 %v1290, %v1305
    %v1359 = vadd.f32 %v1291, %v1305
    %v1360 = vadd.f32 %v1292, %v1305
    %v1361 = vadd.f32 %v1293, %v1305
    %v1362 = vadd.f32 %v1294, %v1305
    %v1363 = vadd.f32 %v1295, %v1305
    %v1364 = vadd.f32 %v1296, %v1305
    %v1365 = vadd.f32 %v1297, %v1305
    %v1366 = vadd.f32 %v1298, %v1305
    %v1367 = vadd.f32 %v1299, %v1305
    %v1368 = vadd.f32 %v1300, %v1305
    %v1369 = vadd.f32 %v1301, %v1305
    %v1370 = vpack.c.bf16 %v1307, %v1306
    %v1371 = vpack.c.bf16 %v1309, %v1308
    %v1372 = vpack.c.bf16 %v1311, %v1310
    %v1373 = vpack.c.bf16 %v1313, %v1312
    %v1374 = vpack.c.bf16 %v1315, %v1314
    %v1375 = vpack.c.bf16 %v1317, %v1316
    %v1376 = vpack.c.bf16 %v1319, %v1318
    %v1377 = vpack.c.bf16 %v1321, %v1320
    %v1378 = vpack.c.bf16 %v1323, %v1322
    %v1379 = vpack.c.bf16 %v1325, %v1324
    %v1380 = vpack.c.bf16 %v1327, %v1326
    %v1381 = vpack.c.bf16 %v1329, %v1328
    %v1382 = vpack.c.bf16 %v1331, %v1330
    %v1383 = vpack.c.bf16 %v1333, %v1332
    %v1384 = vpack.c.bf16 %v1335, %v1334
    %v1385 = vpack.c.bf16 %v1337, %v1336
    %v1386 = vpack.c.bf16 %v1339, %v1338
    %v1387 = vpack.c.bf16 %v1341, %v1340
    %v1388 = vpack.c.bf16 %v1343, %v1342
    %v1389 = vpack.c.bf16 %v1345, %v1344
    %v1390 = vpack.c.bf16 %v1347, %v1346
    %v1391 = vpack.c.bf16 %v1349, %v1348
    %v1392 = vpack.c.bf16 %v1351, %v1350
    %v1393 = vpack.c.bf16 %v1353, %v1352
    %v1394 = vpack.c.bf16 %v1355, %v1354
    %v1395 = vpack.c.bf16 %v1357, %v1356
    %v1396 = vpack.c.bf16 %v1359, %v1358
    %v1397 = vpack.c.bf16 %v1361, %v1360
    %v1398 = vpack.c.bf16 %v1363, %v1362
    %v1399 = vpack.c.bf16 %v1365, %v1364
    %v1400 = vpack.c.bf16 %v1367, %v1366
    %v1401 = vpack.c.bf16 %v1369, %v1368
    %v1434 = vunpack.c.l.b16 %v1370
    %v1435 = vunpack.c.h.b16 %v1370
    %v1436 = vunpack.c.l.b16 %v1371
    %v1437 = vunpack.c.h.b16 %v1371
    %v1438 = vunpack.c.l.b16 %v1372
    %v1439 = vunpack.c.h.b16 %v1372
    %v1440 = vunpack.c.l.b16 %v1373
    %v1441 = vunpack.c.h.b16 %v1373
    %v1442 = vunpack.c.l.b16 %v1374
    %v1443 = vunpack.c.h.b16 %v1374
    %v1444 = vunpack.c.l.b16 %v1375
    %v1445 = vunpack.c.h.b16 %v1375
    %v1446 = vunpack.c.l.b16 %v1376
    %v1447 = vunpack.c.h.b16 %v1376
    %v1448 = vunpack.c.l.b16 %v1377
    %v1449 = vunpack.c.h.b16 %v1377
    %v1450 = vunpack.c.l.b16 %v1378
    %v1451 = vunpack.c.h.b16 %v1378
    %v1452 = vunpack.c.l.b16 %v1379
    %v1453 = vunpack.c.h.b16 %v1379
    %v1454 = vunpack.c.l.b16 %v1380
    %v1455 = vunpack.c.h.b16 %v1380
    %v1456 = vunpack.c.l.b16 %v1381
    %v1457 = vunpack.c.h.b16 %v1381
    %v1458 = vunpack.c.l.b16 %v1382
    %v1459 = vunpack.c.h.b16 %v1382
    %v1460 = vunpack.c.l.b16 %v1383
    %v1461 = vunpack.c.h.b16 %v1383
    %v1462 = vunpack.c.l.b16 %v1384
    %v1463 = vunpack.c.h.b16 %v1384
    %v1464 = vunpack.c.l.b16 %v1385
    %v1465 = vunpack.c.h.b16 %v1385
    %v1466 = vunpack.c.l.b16 %v1386
    %v1467 = vunpack.c.h.b16 %v1386
    %v1468 = vunpack.c.l.b16 %v1387
    %v1469 = vunpack.c.h.b16 %v1387
    %v1470 = vunpack.c.l.b16 %v1388
    %v1471 = vunpack.c.h.b16 %v1388
    %v1472 = vunpack.c.l.b16 %v1389
    %v1473 = vunpack.c.h.b16 %v1389
    %v1474 = vunpack.c.l.b16 %v1390
    %v1475 = vunpack.c.h.b16 %v1390
    %v1476 = vunpack.c.l.b16 %v1391
    %v1477 = vunpack.c.h.b16 %v1391
    %v1478 = vunpack.c.l.b16 %v1392
    %v1479 = vunpack.c.h.b16 %v1392
    %v1480 = vunpack.c.l.b16 %v1393
    %v1481 = vunpack.c.h.b16 %v1393
    %v1482 = vunpack.c.l.b16 %v1394
    %v1483 = vunpack.c.h.b16 %v1394
    %v1484 = vunpack.c.l.b16 %v1395
    %v1485 = vunpack.c.h.b16 %v1395
    %v1486 = vunpack.c.l.b16 %v1396
    %v1487 = vunpack.c.h.b16 %v1396
    %v1488 = vunpack.c.l.b16 %v1397
    %v1489 = vunpack.c.h.b16 %v1397
    %v1490 = vunpack.c.l.b16 %v1398
    %v1491 = vunpack.c.h.b16 %v1398
    %v1492 = vunpack.c.l.b16 %v1399
    %v1493 = vunpack.c.h.b16 %v1399
    %v1494 = vunpack.c.l.b16 %v1400
    %v1495 = vunpack.c.h.b16 %v1400
    %v1496 = vunpack.c.l.b16 %v1401
    %v1497 = vunpack.c.h.b16 %v1401
    %v1498 = vpack.c.b16 %v1434, %v1434
    %v1499 = vpack.c.b16 %v1435, %v1435
    %v1500 = vpack.c.b16 %v1436, %v1436
    %v1501 = vpack.c.b16 %v1437, %v1437
    %v1502 = vpack.c.b16 %v1438, %v1438
    %v1503 = vpack.c.b16 %v1439, %v1439
    %v1504 = vpack.c.b16 %v1440, %v1440
    %v1505 = vpack.c.b16 %v1441, %v1441
    %v1506 = vpack.c.b16 %v1442, %v1442
    %v1507 = vpack.c.b16 %v1443, %v1443
    %v1508 = vpack.c.b16 %v1444, %v1444
    %v1509 = vpack.c.b16 %v1445, %v1445
    %v1510 = vpack.c.b16 %v1446, %v1446
    %v1511 = vpack.c.b16 %v1447, %v1447
    %v1512 = vpack.c.b16 %v1448, %v1448
    %v1513 = vpack.c.b16 %v1449, %v1449
    %v1514 = vpack.c.b16 %v1450, %v1450
    %v1515 = vpack.c.b16 %v1451, %v1451
    %v1516 = vpack.c.b16 %v1452, %v1452
    %v1517 = vpack.c.b16 %v1453, %v1453
    %v1518 = vpack.c.b16 %v1454, %v1454
    %v1519 = vpack.c.b16 %v1455, %v1455
    %v1520 = vpack.c.b16 %v1456, %v1456
    %v1521 = vpack.c.b16 %v1457, %v1457
    %v1522 = vpack.c.b16 %v1458, %v1458
    %v1523 = vpack.c.b16 %v1459, %v1459
    %v1524 = vpack.c.b16 %v1460, %v1460
    %v1525 = vpack.c.b16 %v1461, %v1461
    %v1526 = vpack.c.b16 %v1462, %v1462
    %v1527 = vpack.c.b16 %v1463, %v1463
    %v1528 = vpack.c.b16 %v1464, %v1464
    %v1529 = vpack.c.b16 %v1465, %v1465
    %v1530 = vpack.c.b16 %v1466, %v1466
    %v1531 = vpack.c.b16 %v1467, %v1467
    %v1532 = vpack.c.b16 %v1468, %v1468
    %v1533 = vpack.c.b16 %v1469, %v1469
    %v1534 = vpack.c.b16 %v1470, %v1470
    %v1535 = vpack.c.b16 %v1471, %v1471
    %v1536 = vpack.c.b16 %v1472, %v1472
    %v1537 = vpack.c.b16 %v1473, %v1473
    %v1538 = vpack.c.b16 %v1474, %v1474
    %v1539 = vpack.c.b16 %v1475, %v1475
    %v1540 = vpack.c.b16 %v1476, %v1476
    %v1541 = vpack.c.b16 %v1477, %v1477
    %v1542 = vpack.c.b16 %v1478, %v1478
    %v1543 = vpack.c.b16 %v1479, %v1479
    %v1544 = vpack.c.b16 %v1480, %v1480
    %v1545 = vpack.c.b16 %v1481, %v1481
    %v1546 = vpack.c.b16 %v1482, %v1482
    %v1547 = vpack.c.b16 %v1483, %v1483
    %v1548 = vpack.c.b16 %v1484, %v1484
    %v1549 = vpack.c.b16 %v1485, %v1485
    %v1550 = vpack.c.b16 %v1486, %v1486
    %v1551 = vpack.c.b16 %v1487, %v1487
    %v1552 = vpack.c.b16 %v1488, %v1488
    %v1553 = vpack.c.b16 %v1489, %v1489
    %v1554 = vpack.c.b16 %v1490, %v1490
    %v1555 = vpack.c.b16 %v1491, %v1491
    %v1556 = vpack.c.b16 %v1492, %v1492
    %v1557 = vpack.c.b16 %v1493, %v1493
    %v1558 = vpack.c.b16 %v1494, %v1494
    %v1559 = vpack.c.b16 %v1495, %v1495
    %v1560 = vpack.c.b16 %v1496, %v1496
    %v1561 = vpack.c.b16 %v1497, %v1497
    %1626 = vst [vmem:[#allocation7] sm:$0xf] %v1498
    %1627 = vst [vmem:[#allocation7 + $0x4] sm:$0xf] %v1499
    %1628 = vst [vmem:[#allocation7 + $0x8] sm:$0xf] %v1500
    %1629 = vst [vmem:[#allocation7 + $0xc] sm:$0xf] %v1501
    %1630 = vst [vmem:[#allocation7 + $0x10] sm:$0xf] %v1502
    %1631 = vst [vmem:[#allocation7 + $0x14] sm:$0xf] %v1503
    %1632 = vst [vmem:[#allocation7 + $0x18] sm:$0xf] %v1504
    %1633 = vst [vmem:[#allocation7 + $0x1c] sm:$0xf] %v1505
    %1634 = vst [vmem:[#allocation7 + $0x20] sm:$0xf] %v1506
    %1635 = vst [vmem:[#allocation7 + $0x24] sm:$0xf] %v1507
    %1636 = vst [vmem:[#allocation7 + $0x28] sm:$0xf] %v1508
    %1637 = vst [vmem:[#allocation7 + $0x2c] sm:$0xf] %v1509
    %1638 = vst [vmem:[#allocation7 + $0x30] sm:$0xf] %v1510
    %1639 = vst [vmem:[#allocation7 + $0x34] sm:$0xf] %v1511
    %1640 = vst [vmem:[#allocation7 + $0x38] sm:$0xf] %v1512
    %1641 = vst [vmem:[#allocation7 + $0x3c] sm:$0xf] %v1513
    %1642 = vst [vmem:[#allocation7 + $0x40] sm:$0xf] %v1514
    %1643 = vst [vmem:[#allocation7 + $0x44] sm:$0xf] %v1515
    %1644 = vst [vmem:[#allocation7 + $0x48] sm:$0xf] %v1516
    %1645 = vst [vmem:[#allocation7 + $0x4c] sm:$0xf] %v1517
    %1646 = vst [vmem:[#allocation7 + $0x50] sm:$0xf] %v1518
    %1647 = vst [vmem:[#allocation7 + $0x54] sm:$0xf] %v1519
    %1648 = vst [vmem:[#allocation7 + $0x58] sm:$0xf] %v1520
    %1649 = vst [vmem:[#allocation7 + $0x5c] sm:$0xf] %v1521
    %1650 = vst [vmem:[#allocation7 + $0x60] sm:$0xf] %v1522
    %1651 = vst [vmem:[#allocation7 + $0x64] sm:$0xf] %v1523
    %1652 = vst [vmem:[#allocation7 + $0x68] sm:$0xf] %v1524
    %1653 = vst [vmem:[#allocation7 + $0x6c] sm:$0xf] %v1525
    %1654 = vst [vmem:[#allocation7 + $0x70] sm:$0xf] %v1526
    %1655 = vst [vmem:[#allocation7 + $0x74] sm:$0xf] %v1527
    %1656 = vst [vmem:[#allocation7 + $0x78] sm:$0xf] %v1528
    %1657 = vst [vmem:[#allocation7 + $0x7c] sm:$0xf] %v1529
    %1658 = vst [vmem:[#allocation7 + $0x80] sm:$0xf] %v1530
    %1659 = vst [vmem:[#allocation7 + $0x84] sm:$0xf] %v1531
    %1660 = vst [vmem:[#allocation7 + $0x88] sm:$0xf] %v1532
    %1661 = vst [vmem:[#allocation7 + $0x8c] sm:$0xf] %v1533
    %1662 = vst [vmem:[#allocation7 + $0x90] sm:$0xf] %v1534
    %1663 = vst [vmem:[#allocation7 + $0x94] sm:$0xf] %v1535
    %1664 = vst [vmem:[#allocation7 + $0x98] sm:$0xf] %v1536
    %1665 = vst [vmem:[#allocation7 + $0x9c] sm:$0xf] %v1537
    %1666 = vst [vmem:[#allocation7 + $0xa0] sm:$0xf] %v1538
    %1667 = vst [vmem:[#allocation7 + $0xa4] sm:$0xf] %v1539
    %1668 = vst [vmem:[#allocation7 + $0xa8] sm:$0xf] %v1540
    %1669 = vst [vmem:[#allocation7 + $0xac] sm:$0xf] %v1541
    %1670 = vst [vmem:[#allocation7 + $0xb0] sm:$0xf] %v1542
    %1671 = vst [vmem:[#allocation7 + $0xb4] sm:$0xf] %v1543
    %1672 = vst [vmem:[#allocation7 + $0xb8] sm:$0xf] %v1544
    %1673 = vst [vmem:[#allocation7 + $0xbc] sm:$0xf] %v1545
    %1674 = vst [vmem:[#allocation7 + $0xc0] sm:$0xf] %v1546
    %1675 = vst [vmem:[#allocation7 + $0xc4] sm:$0xf] %v1547
    %1676 = vst [vmem:[#allocation7 + $0xc8] sm:$0xf] %v1548
    %1677 = vst [vmem:[#allocation7 + $0xcc] sm:$0xf] %v1549
    %1678 = vst [vmem:[#allocation7 + $0xd0] sm:$0xf] %v1550
    %1679 = vst [vmem:[#allocation7 + $0xd4] sm:$0xf] %v1551
    %1680 = vst [vmem:[#allocation7 + $0xd8] sm:$0xf] %v1552
    %1681 = vst [vmem:[#allocation7 + $0xdc] sm:$0xf] %v1553
    %1682 = vst [vmem:[#allocation7 + $0xe0] sm:$0xf] %v1554
    %1683 = vst [vmem:[#allocation7 + $0xe4] sm:$0xf] %v1555
    %1684 = vst [vmem:[#allocation7 + $0xe8] sm:$0xf] %v1556
    %1685 = vst [vmem:[#allocation7 + $0xec] sm:$0xf] %v1557
    %1686 = vst [vmem:[#allocation7 + $0xf0] sm:$0xf] %v1558
    %1687 = vst [vmem:[#allocation7 + $0xf4] sm:$0xf] %v1559
    %1688 = vst [vmem:[#allocation7 + $0xf8] sm:$0xf] %v1560
    %1689 = vst [vmem:[#allocation7 + $0xfc] sm:$0xf] %v1561
    // Predicated region
    $region22: #{tpu_custom_call.1} parent=1 // pred_check
      _
    $region23: #{tpu_custom_call.1} parent=1 // pred_check_branch
      %1691 = sbr.rel (0) target = $region25
    $region24: #{tpu_custom_call.1} parent=1 // pred_region
      %s1693 = ssub.s32 4096, 4096
      %1694 = vsyncadd [#allocation4], %s1693
      %s1695 = sshll.u32 [#allocation7], 4
      %s1696 = int_to_ptr.vmem [resolvable:$true] %s1695
      %1701 = dma.vmem_to_hbm [thread:$0]  %s1696, 4096, %s3, [#allocation4], 64, 64, 4
    $region25: #{tpu_custom_call.1} parent=1 // pred_fallthru
      _
    // Predicated region
    $region26: #{tpu_custom_call.1} parent=1 // pred_check
      _
    $region27: #{tpu_custom_call.1} parent=1 // pred_check_branch
      %1703 = sbr.rel (0) target = $region29
    $region28: #{tpu_custom_call.1} parent=1 // pred_region
      %1704 = dma.done [#allocation4], 4096
    $region29: #{tpu_custom_call.1} parent=1 // pred_fallthru
      _
    %1705 = vsyncpa [#allocation3], 1
    %1706 = vsyncpa [#allocation6], 1
    %1707 = vsyncpa [#allocation4], 1

</llo_original>
